<compile_context>
chip_gen: v6e
topology: v6e:2x2x1
jax: 0.10.0
libtpu: 0.0.40
codegen_flags: <defaults>
</compile_context>

<pallas_src>
import jax
import jax.numpy as jnp
from jax.experimental import pallas as pl
from jax.experimental.pallas import tpu as pltpu  # noqa: F401 (TPU backend; not otherwise needed here)

# Small, hardware-friendly hyperparameters consistent with the module
# (spec uses n_embd=400, block_size=256; we pick a lane-dense small config).
N_EMBD = 128
N_HEAD = 4
HEAD_SIZE = N_EMBD // N_HEAD   # 32
NEG_INF = -1e30                # finite mask sentinel (NaN-safe vs. true -inf)


# ----------------------------------------------------------------------------
# Fused MHA kernel: whole batch per invocation, fused QKV, batched attention
# ----------------------------------------------------------------------------
def mha_kernel(x_ref, wqkv_ref, wproj_ref, bproj_ref, o_ref):
    x = x_ref[...].astype(jnp.float32)            # (B, T, C)
    B, T, C = x.shape
    scale = float(C) ** -0.5                      # matches PyTorch: C**(-0.5), C = n_embd

    # --- fused Q/K/V projection: one (B*T, C) x (C, 3C) matmul ---------------
    xf = x.reshape(B * T, C)
    qkv = jnp.dot(xf, wqkv_ref[...], preferred_element_type=jnp.float32)   # (B*T, 3C)
    q = qkv[:, 0 * C:1 * C].reshape(B, T, C)
    k = qkv[:, 1 * C:2 * C].reshape(B, T, C)
    v = qkv[:, 2 * C:3 * C].reshape(B, T, C)

    # --- causal mask, built once (hoisted out of the head loop) --------------
    row = jax.lax.broadcasted_iota(jnp.int32, (T, T), 0)
    col = jax.lax.broadcasted_iota(jnp.int32, (T, T), 1)
    causal = (row >= col)[None, :, :]             # (1, T, T), broadcasts over B

    # --- per-head attention: static 4-way unroll, batched over B via einsum --
    head_outs = []
    for h in range(N_HEAD):
        sl = slice(h * HEAD_SIZE, (h + 1) * HEAD_SIZE)
        qh, kh, vh = q[:, :, sl], k[:, :, sl], v[:, :, sl]      # (B, T, D)
        wei = jnp.einsum("btd,bsd->bts", qh, kh,
                         preferred_element_type=jnp.float32) * scale
        wei = jnp.where(causal, wei, NEG_INF)
        wei = wei - jnp.max(wei, axis=-1, keepdims=True)        # stable softmax
        p = jnp.exp(wei)
        p = p * pl.reciprocal(jnp.sum(p, axis=-1, keepdims=True), approx=True)
        # dropout(p): identity in eval mode
        head_outs.append(jnp.einsum("bts,bsd->btd", p, vh,
                                    preferred_element_type=jnp.float32))
    attn = jnp.concatenate(head_outs, axis=-1)    # (B, T, H*D); concat order = head order

    # --- output projection ----------------------------------------------------
    out = jnp.dot(attn.reshape(B * T, C), wproj_ref[...],
                  preferred_element_type=jnp.float32) + bproj_ref[0]
    # dropout(out): identity in eval mode
    o_ref[...] = out.reshape(B, T, C).astype(o_ref.dtype)


def multi_head_attention(x, wq, wk, wv, wproj, bproj):
    """x: (B, T, C).  wq/wk/wv: (C, C) with head h occupying columns
    [h*HEAD_SIZE:(h+1)*HEAD_SIZE] (the per-head Linear weights stacked as
    (in, out)).  wproj: (C, C), bproj: (1, C).  Returns (B, T, C)."""
    B, T, C = x.shape
    wqkv = jnp.concatenate([wq, wk, wv], axis=1)  # (C, 3C) — one-time glue op
    return pl.pallas_call(
        mha_kernel,
        out_shape=jax.ShapeDtypeStruct((B, T, C), x.dtype),
        # No grid / no BlockSpecs: the full batch (weights + activations are
        # well under 1 MiB) lives in VMEM for the single invocation, so there
        # is no per-step pipeline overhead and no HBM activation traffic
        # between the Q/K/V, attention, and projection stages.
    )(x, wqkv, wproj, bproj)


# ----------------------------------------------------------------------------
# Pure-JAX reference (mirrors the PyTorch forward exactly, eval mode)
# ----------------------------------------------------------------------------
def mha_reference(x, wq, wk, wv, wproj, bproj):
    B, T, C = x.shape
    tril = jnp.tril(jnp.ones((T, T), dtype=bool))
    outs = []
    for h in range(N_HEAD):
        sl = slice(h * HEAD_SIZE, (h + 1) * HEAD_SIZE)
        qh, kh, vh = x @ wq[:, sl], x @ wk[:, sl], x @ wv[:, sl]
        wei = jnp.einsum("btd,bsd->bts", qh, kh) * (C ** -0.5)
        wei = jnp.where(tril[None], wei, -jnp.inf)
        wei = jax.nn.softmax(wei, axis=-1)
        outs.append(jnp.einsum("bts,bsd->btd", wei, vh))
    attn = jnp.concatenate(outs, axis=-1)
    return attn @ wproj + bproj[0]


if __name__ == "__main__":
    key = jax.random.PRNGKey(0)
    kx, k0, k1, k2, k3, k4 = jax.random.split(key, 6)

    B, T = 2, 8
    x = jax.random.normal(kx, (B, T, N_EMBD), dtype=jnp.float32)
    wq = 0.02 * jax.random.normal(k0, (N_EMBD, N_EMBD), dtype=jnp.float32)
    wk = 0.02 * jax.random.normal(k1, (N_EMBD, N_EMBD), dtype=jnp.float32)
    wv = 0.02 * jax.random.normal(k2, (N_EMBD, N_EMBD), dtype=jnp.float32)
    wproj = 0.02 * jax.random.normal(k3, (N_EMBD, N_EMBD), dtype=jnp.float32)
    bproj = 0.02 * jax.random.normal(k4, (1, N_EMBD), dtype=jnp.float32)

    out = jax.jit(multi_head_attention)(x, wq, wk, wv, wproj, bproj)
    jax.block_until_ready(out)

    ref = mha_reference(x, wq, wk, wv, wproj, bproj)
    assert out.shape == (B, T, N_EMBD)
    assert bool(jnp.all(jnp.isfinite(out)))
    assert bool(jnp.allclose(out, ref, atol=2e-4, rtol=1e-2)), \
        float(jnp.max(jnp.abs(out - ref)))
    print("KERNEL_OK")
</pallas_src>

<mosaic_0001>
module attributes {stable_mosaic.version = 11 : i64} {
  func.func @mha_kernel(%arg0: memref<2x8x128xf32, #tpu.memory_space<vmem>>, %arg1: memref<128x384xf32, #tpu.memory_space<vmem>>, %arg2: memref<128x128xf32, #tpu.memory_space<vmem>>, %arg3: memref<1x128xf32, #tpu.memory_space<vmem>>, %arg4: memref<2x8x128xf32, #tpu.memory_space<vmem>>) attributes {dimension_semantics = [], scalar_prefetch = 0 : i64, scratch_operands = 0 : i64, tpu.core_type = #tpu.core_type<tc>} {
    %c0 = arith.constant 0 : index
    %c0_0 = arith.constant 0 : index
    %c0_1 = arith.constant 0 : index
    %0 = vector.load %arg0[%c0, %c0_0, %c0_1] : memref<2x8x128xf32, #tpu.memory_space<vmem>>, vector<2x8x128xf32>
    %1 = vector.shape_cast %0 : vector<2x8x128xf32> to vector<16x128xf32>
    %c0_2 = arith.constant 0 : index
    %c0_3 = arith.constant 0 : index
    %2 = vector.load %arg1[%c0_2, %c0_3] : memref<128x384xf32, #tpu.memory_space<vmem>>, vector<128x384xf32>
    %cst = arith.constant dense<0.000000e+00> : vector<16x384xf32>
    %3 = tpu.matmul %1, %2, %cst {dimension_numbers = #tpu.dot_dimension_numbers<[1], [0], [0], [1], [0, 0, 1, 1], [], []>} : vector<16x128xf32>, vector<128x384xf32>, vector<16x384xf32> -> vector<16x384xf32>
    %4 = vector.extract_strided_slice %3 {offsets = [0, 0], sizes = [16, 128], strides = [1, 1]} : vector<16x384xf32> to vector<16x128xf32>
    %5 = vector.shape_cast %4 : vector<16x128xf32> to vector<2x8x128xf32>
    %6 = vector.extract_strided_slice %3 {offsets = [0, 128], sizes = [16, 128], strides = [1, 1]} : vector<16x384xf32> to vector<16x128xf32>
    %7 = vector.shape_cast %6 : vector<16x128xf32> to vector<2x8x128xf32>
    %8 = vector.extract_strided_slice %3 {offsets = [0, 256], sizes = [16, 128], strides = [1, 1]} : vector<16x384xf32> to vector<16x128xf32>
    %9 = vector.shape_cast %8 : vector<16x128xf32> to vector<2x8x128xf32>
    %10 = tpu.iota {dimensions = array<i32: 0>} : vector<8x8xi32>
    %11 = tpu.iota {dimensions = array<i32: 1>} : vector<8x8xi32>
    %12 = arith.cmpi sge, %10, %11 : vector<8x8xi32>
    %13 = vector.shape_cast %12 : vector<8x8xi1> to vector<1x8x8xi1>
    %14 = vector.extract_strided_slice %5 {offsets = [0, 0, 0], sizes = [2, 8, 32], strides = [1, 1, 1]} : vector<2x8x128xf32> to vector<2x8x32xf32>
    %15 = vector.extract_strided_slice %7 {offsets = [0, 0, 0], sizes = [2, 8, 32], strides = [1, 1, 1]} : vector<2x8x128xf32> to vector<2x8x32xf32>
    %16 = vector.extract_strided_slice %9 {offsets = [0, 0, 0], sizes = [2, 8, 32], strides = [1, 1, 1]} : vector<2x8x128xf32> to vector<2x8x32xf32>
    "tpu.trace_start"() <{level = 10 : i32, message = "btd,bsd->bts"}> : () -> ()
    %cst_4 = arith.constant dense<0.000000e+00> : vector<2x8x8xf32>
    %17 = tpu.matmul %14, %15, %cst_4 {dimension_numbers = #tpu.dot_dimension_numbers<[2], [2], [1], [1], [0, 0, 0, 1, 1, 1], [0], [0]>} : vector<2x8x32xf32>, vector<2x8x32xf32>, vector<2x8x8xf32> -> vector<2x8x8xf32>
    "tpu.trace_stop"() : () -> ()
    %cst_5 = arith.constant 0.0883883461 : f32
    %18 = vector.broadcast %cst_5 : f32 to vector<2x8x8xf32>
    %19 = arith.mulf %17, %18 : vector<2x8x8xf32>
    %cst_6 = arith.constant -1.000000e+30 : f32
    %20 = vector.shape_cast %13 : vector<1x8x8xi1> to vector<1x8x8xi1>
    %21 = vector.broadcast %20 : vector<1x8x8xi1> to vector<2x8x8xi1>
    %22 = vector.broadcast %cst_6 : f32 to vector<2x8x8xf32>
    %23 = arith.select %21, %19, %22 : vector<2x8x8xi1>, vector<2x8x8xf32>
    %cst_7 = arith.constant dense<0xFF800000> : vector<2x8xf32>
    %24 = vector.multi_reduction <maximumf>, %23, %cst_7 [2] : vector<2x8x8xf32> to vector<2x8xf32>
    %25 = vector.shape_cast %24 : vector<2x8xf32> to vector<2x8x1xf32>
    %26 = vector.broadcast %25 : vector<2x8x1xf32> to vector<2x8x8xf32>
    %27 = arith.subf %23, %26 : vector<2x8x8xf32>
    %28 = math.exp %27 : vector<2x8x8xf32>
    %cst_8 = arith.constant dense<0.000000e+00> : vector<2x8xf32>
    %29 = vector.multi_reduction <add>, %28, %cst_8 [2] : vector<2x8x8xf32> to vector<2x8xf32>
    %30 = vector.shape_cast %29 : vector<2x8xf32> to vector<2x8x1xf32>
    %31 = tpu.reciprocal %30 {approx = true} : vector<2x8x1xf32> -> vector<2x8x1xf32>
    %32 = vector.broadcast %31 : vector<2x8x1xf32> to vector<2x8x8xf32>
    %33 = arith.mulf %28, %32 : vector<2x8x8xf32>
    "tpu.trace_start"() <{level = 10 : i32, message = "bts,bsd->btd"}> : () -> ()
    %cst_9 = arith.constant dense<0.000000e+00> : vector<2x8x32xf32>
    %34 = tpu.matmul %33, %16, %cst_9 {dimension_numbers = #tpu.dot_dimension_numbers<[2], [1], [1], [2], [0, 0, 0, 1, 1, 2], [0], [0]>} : vector<2x8x8xf32>, vector<2x8x32xf32>, vector<2x8x32xf32> -> vector<2x8x32xf32>
    "tpu.trace_stop"() : () -> ()
    %35 = vector.extract_strided_slice %5 {offsets = [0, 0, 32], sizes = [2, 8, 32], strides = [1, 1, 1]} : vector<2x8x128xf32> to vector<2x8x32xf32>
    %36 = vector.extract_strided_slice %7 {offsets = [0, 0, 32], sizes = [2, 8, 32], strides = [1, 1, 1]} : vector<2x8x128xf32> to vector<2x8x32xf32>
    %37 = vector.extract_strided_slice %9 {offsets = [0, 0, 32], sizes = [2, 8, 32], strides = [1, 1, 1]} : vector<2x8x128xf32> to vector<2x8x32xf32>
    "tpu.trace_start"() <{level = 10 : i32, message = "btd,bsd->bts"}> : () -> ()
    %cst_10 = arith.constant dense<0.000000e+00> : vector<2x8x8xf32>
    %38 = tpu.matmul %35, %36, %cst_10 {dimension_numbers = #tpu.dot_dimension_numbers<[2], [2], [1], [1], [0, 0, 0, 1, 1, 1], [0], [0]>} : vector<2x8x32xf32>, vector<2x8x32xf32>, vector<2x8x8xf32> -> vector<2x8x8xf32>
    "tpu.trace_stop"() : () -> ()
    %cst_11 = arith.constant 0.0883883461 : f32
    %39 = vector.broadcast %cst_11 : f32 to vector<2x8x8xf32>
    %40 = arith.mulf %38, %39 : vector<2x8x8xf32>
    %cst_12 = arith.constant -1.000000e+30 : f32
    %41 = vector.shape_cast %13 : vector<1x8x8xi1> to vector<1x8x8xi1>
    %42 = vector.broadcast %41 : vector<1x8x8xi1> to vector<2x8x8xi1>
    %43 = vector.broadcast %cst_12 : f32 to vector<2x8x8xf32>
    %44 = arith.select %42, %40, %43 : vector<2x8x8xi1>, vector<2x8x8xf32>
    %cst_13 = arith.constant dense<0xFF800000> : vector<2x8xf32>
    %45 = vector.multi_reduction <maximumf>, %44, %cst_13 [2] : vector<2x8x8xf32> to vector<2x8xf32>
    %46 = vector.shape_cast %45 : vector<2x8xf32> to vector<2x8x1xf32>
    %47 = vector.broadcast %46 : vector<2x8x1xf32> to vector<2x8x8xf32>
    %48 = arith.subf %44, %47 : vector<2x8x8xf32>
    %49 = math.exp %48 : vector<2x8x8xf32>
    %cst_14 = arith.constant dense<0.000000e+00> : vector<2x8xf32>
    %50 = vector.multi_reduction <add>, %49, %cst_14 [2] : vector<2x8x8xf32> to vector<2x8xf32>
    %51 = vector.shape_cast %50 : vector<2x8xf32> to vector<2x8x1xf32>
    %52 = tpu.reciprocal %51 {approx = true} : vector<2x8x1xf32> -> vector<2x8x1xf32>
    %53 = vector.broadcast %52 : vector<2x8x1xf32> to vector<2x8x8xf32>
    %54 = arith.mulf %49, %53 : vector<2x8x8xf32>
    "tpu.trace_start"() <{level = 10 : i32, message = "bts,bsd->btd"}> : () -> ()
    %cst_15 = arith.constant dense<0.000000e+00> : vector<2x8x32xf32>
    %55 = tpu.matmul %54, %37, %cst_15 {dimension_numbers = #tpu.dot_dimension_numbers<[2], [1], [1], [2], [0, 0, 0, 1, 1, 2], [0], [0]>} : vector<2x8x8xf32>, vector<2x8x32xf32>, vector<2x8x32xf32> -> vector<2x8x32xf32>
    "tpu.trace_stop"() : () -> ()
    %56 = vector.extract_strided_slice %5 {offsets = [0, 0, 64], sizes = [2, 8, 32], strides = [1, 1, 1]} : vector<2x8x128xf32> to vector<2x8x32xf32>
    %57 = vector.extract_strided_slice %7 {offsets = [0, 0, 64], sizes = [2, 8, 32], strides = [1, 1, 1]} : vector<2x8x128xf32> to vector<2x8x32xf32>
    %58 = vector.extract_strided_slice %9 {offsets = [0, 0, 64], sizes = [2, 8, 32], strides = [1, 1, 1]} : vector<2x8x128xf32> to vector<2x8x32xf32>
    "tpu.trace_start"() <{level = 10 : i32, message = "btd,bsd->bts"}> : () -> ()
    %cst_16 = arith.constant dense<0.000000e+00> : vector<2x8x8xf32>
    %59 = tpu.matmul %56, %57, %cst_16 {dimension_numbers = #tpu.dot_dimension_numbers<[2], [2], [1], [1], [0, 0, 0, 1, 1, 1], [0], [0]>} : vector<2x8x32xf32>, vector<2x8x32xf32>, vector<2x8x8xf32> -> vector<2x8x8xf32>
    "tpu.trace_stop"() : () -> ()
    %cst_17 = arith.constant 0.0883883461 : f32
    %60 = vector.broadcast %cst_17 : f32 to vector<2x8x8xf32>
    %61 = arith.mulf %59, %60 : vector<2x8x8xf32>
    %cst_18 = arith.constant -1.000000e+30 : f32
    %62 = vector.shape_cast %13 : vector<1x8x8xi1> to vector<1x8x8xi1>
    %63 = vector.broadcast %62 : vector<1x8x8xi1> to vector<2x8x8xi1>
    %64 = vector.broadcast %cst_18 : f32 to vector<2x8x8xf32>
    %65 = arith.select %63, %61, %64 : vector<2x8x8xi1>, vector<2x8x8xf32>
    %cst_19 = arith.constant dense<0xFF800000> : vector<2x8xf32>
    %66 = vector.multi_reduction <maximumf>, %65, %cst_19 [2] : vector<2x8x8xf32> to vector<2x8xf32>
    %67 = vector.shape_cast %66 : vector<2x8xf32> to vector<2x8x1xf32>
    %68 = vector.broadcast %67 : vector<2x8x1xf32> to vector<2x8x8xf32>
    %69 = arith.subf %65, %68 : vector<2x8x8xf32>
    %70 = math.exp %69 : vector<2x8x8xf32>
    %cst_20 = arith.constant dense<0.000000e+00> : vector<2x8xf32>
    %71 = vector.multi_reduction <add>, %70, %cst_20 [2] : vector<2x8x8xf32> to vector<2x8xf32>
    %72 = vector.shape_cast %71 : vector<2x8xf32> to vector<2x8x1xf32>
    %73 = tpu.reciprocal %72 {approx = true} : vector<2x8x1xf32> -> vector<2x8x1xf32>
    %74 = vector.broadcast %73 : vector<2x8x1xf32> to vector<2x8x8xf32>
    %75 = arith.mulf %70, %74 : vector<2x8x8xf32>
    "tpu.trace_start"() <{level = 10 : i32, message = "bts,bsd->btd"}> : () -> ()
    %cst_21 = arith.constant dense<0.000000e+00> : vector<2x8x32xf32>
    %76 = tpu.matmul %75, %58, %cst_21 {dimension_numbers = #tpu.dot_dimension_numbers<[2], [1], [1], [2], [0, 0, 0, 1, 1, 2], [0], [0]>} : vector<2x8x8xf32>, vector<2x8x32xf32>, vector<2x8x32xf32> -> vector<2x8x32xf32>
    "tpu.trace_stop"() : () -> ()
    %77 = vector.extract_strided_slice %5 {offsets = [0, 0, 96], sizes = [2, 8, 32], strides = [1, 1, 1]} : vector<2x8x128xf32> to vector<2x8x32xf32>
    %78 = vector.extract_strided_slice %7 {offsets = [0, 0, 96], sizes = [2, 8, 32], strides = [1, 1, 1]} : vector<2x8x128xf32> to vector<2x8x32xf32>
    %79 = vector.extract_strided_slice %9 {offsets = [0, 0, 96], sizes = [2, 8, 32], strides = [1, 1, 1]} : vector<2x8x128xf32> to vector<2x8x32xf32>
    "tpu.trace_start"() <{level = 10 : i32, message = "btd,bsd->bts"}> : () -> ()
    %cst_22 = arith.constant dense<0.000000e+00> : vector<2x8x8xf32>
    %80 = tpu.matmul %77, %78, %cst_22 {dimension_numbers = #tpu.dot_dimension_numbers<[2], [2], [1], [1], [0, 0, 0, 1, 1, 1], [0], [0]>} : vector<2x8x32xf32>, vector<2x8x32xf32>, vector<2x8x8xf32> -> vector<2x8x8xf32>
    "tpu.trace_stop"() : () -> ()
    %cst_23 = arith.constant 0.0883883461 : f32
    %81 = vector.broadcast %cst_23 : f32 to vector<2x8x8xf32>
    %82 = arith.mulf %80, %81 : vector<2x8x8xf32>
    %cst_24 = arith.constant -1.000000e+30 : f32
    %83 = vector.shape_cast %13 : vector<1x8x8xi1> to vector<1x8x8xi1>
    %84 = vector.broadcast %83 : vector<1x8x8xi1> to vector<2x8x8xi1>
    %85 = vector.broadcast %cst_24 : f32 to vector<2x8x8xf32>
    %86 = arith.select %84, %82, %85 : vector<2x8x8xi1>, vector<2x8x8xf32>
    %cst_25 = arith.constant dense<0xFF800000> : vector<2x8xf32>
    %87 = vector.multi_reduction <maximumf>, %86, %cst_25 [2] : vector<2x8x8xf32> to vector<2x8xf32>
    %88 = vector.shape_cast %87 : vector<2x8xf32> to vector<2x8x1xf32>
    %89 = vector.broadcast %88 : vector<2x8x1xf32> to vector<2x8x8xf32>
    %90 = arith.subf %86, %89 : vector<2x8x8xf32>
    %91 = math.exp %90 : vector<2x8x8xf32>
    %cst_26 = arith.constant dense<0.000000e+00> : vector<2x8xf32>
    %92 = vector.multi_reduction <add>, %91, %cst_26 [2] : vector<2x8x8xf32> to vector<2x8xf32>
    %93 = vector.shape_cast %92 : vector<2x8xf32> to vector<2x8x1xf32>
    %94 = tpu.reciprocal %93 {approx = true} : vector<2x8x1xf32> -> vector<2x8x1xf32>
    %95 = vector.broadcast %94 : vector<2x8x1xf32> to vector<2x8x8xf32>
    %96 = arith.mulf %91, %95 : vector<2x8x8xf32>
    "tpu.trace_start"() <{level = 10 : i32, message = "bts,bsd->btd"}> : () -> ()
    %cst_27 = arith.constant dense<0.000000e+00> : vector<2x8x32xf32>
    %97 = tpu.matmul %96, %79, %cst_27 {dimension_numbers = #tpu.dot_dimension_numbers<[2], [1], [1], [2], [0, 0, 0, 1, 1, 2], [0], [0]>} : vector<2x8x8xf32>, vector<2x8x32xf32>, vector<2x8x32xf32> -> vector<2x8x32xf32>
    "tpu.trace_stop"() : () -> ()
    %98 = tpu.concatenate %34, %55, %76, %97 in 2 : vector<2x8x32xf32>, vector<2x8x32xf32>, vector<2x8x32xf32>, vector<2x8x32xf32> -> vector<2x8x128xf32>
    %99 = vector.shape_cast %98 : vector<2x8x128xf32> to vector<16x128xf32>
    %c0_28 = arith.constant 0 : index
    %c0_29 = arith.constant 0 : index
    %100 = vector.load %arg2[%c0_28, %c0_29] : memref<128x128xf32, #tpu.memory_space<vmem>>, vector<128x128xf32>
    %cst_30 = arith.constant dense<0.000000e+00> : vector<16x128xf32>
    %101 = tpu.matmul %99, %100, %cst_30 {dimension_numbers = #tpu.dot_dimension_numbers<[1], [0], [0], [1], [0, 0, 1, 1], [], []>} : vector<16x128xf32>, vector<128x128xf32>, vector<16x128xf32> -> vector<16x128xf32>
    %c0_31 = arith.constant 0 : index
    %c0_32 = arith.constant 0 : index
    %102 = vector.load %arg3[%c0_31, %c0_32] : memref<1x128xf32, #tpu.memory_space<vmem>>, vector<1x128xf32>
    %103 = vector.shape_cast %102 : vector<1x128xf32> to vector<128xf32>
    %104 = vector.shape_cast %103 : vector<128xf32> to vector<1x128xf32>
    %105 = vector.broadcast %104 : vector<1x128xf32> to vector<16x128xf32>
    %106 = arith.addf %101, %105 : vector<16x128xf32>
    %107 = vector.shape_cast %106 : vector<16x128xf32> to vector<2x8x128xf32>
    %c0_33 = arith.constant 0 : index
    %c0_34 = arith.constant 0 : index
    %c0_35 = arith.constant 0 : index
    %108 = vector.load %arg4[%c0_33, %c0_34, %c0_35] : memref<2x8x128xf32, #tpu.memory_space<vmem>>, vector<2x8x128xf32>
    tpu.vector_store %arg4[%c0_33, %c0_34, %c0_35], %107 {strides = array<i32>} : memref<2x8x128xf32, #tpu.memory_space<vmem>>, vector<2x8x128xf32>,
    return
  }
}

</mosaic_0001>

<llo_original>
// kernel: multi_head_attention.1
$region0: #{multi_head_attention.1}
  #allocation0 [shape = 'u32[]', space=smem, size = 0x4, offset = 0x4, fixed_abs, tag = 'smem constant byte address 0x4 - core index']
  #allocation1 [shape = 'u32[144,128]{1,0:T(1,128)}', space=vmem, size = 0x12000, scoped, tag = 'internal scratch']
  %s0 = inlined_call_operand.vmem [shape: f32[2,8,128], index: 0, kind: input, shape index: {}]
  %s1 = inlined_call_operand.vmem [shape: f32[128,384], index: 1, kind: input, shape index: {}]
  %s2 = inlined_call_operand.vmem [shape: f32[128,128], index: 2, kind: input, shape index: {}]
  %s3 = inlined_call_operand.vmem [shape: f32[1,128], index: 3, kind: input, shape index: {}]
  %s4 = inlined_call_operand.hbm [shape: f32[2,8,128], index: 4, kind: output, shape index: {}]
  %s5 = sld [smem:[#allocation0]]
  $region26: #{multi_head_attention.1} parent=0
    _
  %s7 = ssub.s32 1, %s5
  %s8 = scalar_select 0, %s7, %s5
  $region1: #{multi_head_attention.1} parent=0
    #allocation2 [shape = 'u8[8192]{0}', space=vmem, size = 0x2000, scoped, tag = 'output window, operand 0, single buffered']
    #allocation3 [shape = 's32[1]{0}', space=sflag, size = 0x4, scoped, tag = 'scoped memory for multi_head_attention.1']
    %9 = vsyncpa [#allocation3], 0
    // Predicated region
    $region2: #{multi_head_attention.1} parent=1 // pred_check
      _
    $region3: #{multi_head_attention.1} parent=1 // pred_check_branch
      %11 = sbr.rel (0) target = $region5
    $region4: #{multi_head_attention.1} parent=1 // pred_region
      _
    $region5: #{multi_head_attention.1} parent=1 // pred_fallthru
      _
    // Predicated region
    $region6: #{multi_head_attention.1} parent=1 // pred_check
      _
    $region7: #{multi_head_attention.1} parent=1 // pred_check_branch
      %13 = sbr.rel (0) target = $region9
    $region8: #{multi_head_attention.1} parent=1 // pred_region
      _
    $region9: #{multi_head_attention.1} parent=1 // pred_fallthru
      _
    // Predicated region
    $region10: #{multi_head_attention.1} parent=1 // pred_check
      _
    $region11: #{multi_head_attention.1} parent=1 // pred_check_branch
      %15 = sbr.rel (0) target = $region13
    $region12: #{multi_head_attention.1} parent=1 // pred_region
      _
    $region13: #{multi_head_attention.1} parent=1 // pred_fallthru
      _
    // Predicated region
    $region14: #{multi_head_attention.1} parent=1 // pred_check
      _
    $region15: #{multi_head_attention.1} parent=1 // pred_check_branch
      %17 = sbr.rel (0) target = $region17
    $region16: #{multi_head_attention.1} parent=1 // pred_region
      _
    $region17: #{multi_head_attention.1} parent=1 // pred_fallthru
      _
    %v18 = vld [vmem:[%s0] sm:$0xff]
    %v19 = vld [vmem:[%s0 + $0x8] sm:$0xff]
    %v20 = vld [vmem:[%s1] sm:$0xff]
    %v21 = vld [vmem:[%s1 + $0x8] sm:$0xff]
    %v22 = vld [vmem:[%s1 + $0x10] sm:$0xff]
    %v23 = vld [vmem:[%s1 + $0x18] sm:$0xff]
    %v24 = vld [vmem:[%s1 + $0x20] sm:$0xff]
    %v25 = vld [vmem:[%s1 + $0x28] sm:$0xff]
    %v26 = vld [vmem:[%s1 + $0x30] sm:$0xff]
    %v27 = vld [vmem:[%s1 + $0x38] sm:$0xff]
    %v28 = vld [vmem:[%s1 + $0x40] sm:$0xff]
    %v29 = vld [vmem:[%s1 + $0x48] sm:$0xff]
    %v30 = vld [vmem:[%s1 + $0x50] sm:$0xff]
    %v31 = vld [vmem:[%s1 + $0x58] sm:$0xff]
    %v32 = vld [vmem:[%s1 + $0x60] sm:$0xff]
    %v33 = vld [vmem:[%s1 + $0x68] sm:$0xff]
    %v34 = vld [vmem:[%s1 + $0x70] sm:$0xff]
    %v35 = vld [vmem:[%s1 + $0x78] sm:$0xff]
    %v36 = vld [vmem:[%s1 + $0x80] sm:$0xff]
    %v37 = vld [vmem:[%s1 + $0x88] sm:$0xff]
    %v38 = vld [vmem:[%s1 + $0x90] sm:$0xff]
    %v39 = vld [vmem:[%s1 + $0x98] sm:$0xff]
    %v40 = vld [vmem:[%s1 + $0xa0] sm:$0xff]
    %v41 = vld [vmem:[%s1 + $0xa8] sm:$0xff]
    %v42 = vld [vmem:[%s1 + $0xb0] sm:$0xff]
    %v43 = vld [vmem:[%s1 + $0xb8] sm:$0xff]
    %v44 = vld [vmem:[%s1 + $0xc0] sm:$0xff]
    %v45 = vld [vmem:[%s1 + $0xc8] sm:$0xff]
    %v46 = vld [vmem:[%s1 + $0xd0] sm:$0xff]
    %v47 = vld [vmem:[%s1 + $0xd8] sm:$0xff]
    %v48 = vld [vmem:[%s1 + $0xe0] sm:$0xff]
    %v49 = vld [vmem:[%s1 + $0xe8] sm:$0xff]
    %v50 = vld [vmem:[%s1 + $0xf0] sm:$0xff]
    %v51 = vld [vmem:[%s1 + $0xf8] sm:$0xff]
    %v52 = vld [vmem:[%s1 + $0x100] sm:$0xff]
    %v53 = vld [vmem:[%s1 + $0x108] sm:$0xff]
    %v54 = vld [vmem:[%s1 + $0x110] sm:$0xff]
    %v55 = vld [vmem:[%s1 + $0x118] sm:$0xff]
    %v56 = vld [vmem:[%s1 + $0x120] sm:$0xff]
    %v57 = vld [vmem:[%s1 + $0x128] sm:$0xff]
    %v58 = vld [vmem:[%s1 + $0x130] sm:$0xff]
    %v59 = vld [vmem:[%s1 + $0x138] sm:$0xff]
    %v60 = vld [vmem:[%s1 + $0x140] sm:$0xff]
    %v61 = vld [vmem:[%s1 + $0x148] sm:$0xff]
    %v62 = vld [vmem:[%s1 + $0x150] sm:$0xff]
    %v63 = vld [vmem:[%s1 + $0x158] sm:$0xff]
    %v64 = vld [vmem:[%s1 + $0x160] sm:$0xff]
    %v65 = vld [vmem:[%s1 + $0x168] sm:$0xff]
    %v66 = vld [vmem:[%s1 + $0x170] sm:$0xff]
    %v67 = vld [vmem:[%s1 + $0x178] sm:$0xff]
    %68 = vmatprep.subr.mxu0 %v66
    %69 = vmatpush1.msra.mxu0 %v65
    %70 = vmatprep.subr.mxu0 %v63
    %71 = vmatpush1.msra.mxu0 %v62
    %72 = vmatprep.subr.mxu0 %v60
    %73 = vmatpush1.msra.mxu0 %v59
    %74 = vmatprep.subr.mxu0 %v57
    %75 = vmatpush1.msra.mxu0 %v56
    %76 = vmatprep.subr.mxu0 %v54
    %77 = vmatpush1.msra.mxu0 %v53
    %78 = vmatprep.subr.mxu0 %v51
    %79 = vmatpush1.msra.mxu0 %v50
    %80 = vmatprep.subr.mxu0 %v48
    %81 = vmatpush1.msra.mxu0 %v47
    %82 = vmatprep.subr.mxu0 %v45
    %83 = vmatpush1.msra.mxu0 %v44
    %84 = vmatprep.subr.mxu0 %v42
    %85 = vmatpush1.msra.mxu0 %v41
    %86 = vmatprep.subr.mxu0 %v39
    %87 = vmatpush1.msra.mxu0 %v38
    %88 = vmatprep.subr.mxu0 %v36
    %89 = vmatpush1.msra.mxu0 %v35
    %90 = vmatprep.subr.mxu0 %v33
    %91 = vmatpush1.msra.mxu0 %v32
    %92 = vmatprep.subr.mxu0 %v30
    %93 = vmatpush1.msra.mxu0 %v29
    %94 = vmatprep.subr.mxu0 %v27
    %95 = vmatpush1.msra.mxu0 %v26
    %96 = vmatprep.subr.mxu0 %v24
    %97 = vmatpush1.msra.mxu0 %v23
    %98 = vmatprep.subr.mxu0 %v21
    %99 = vmatpush1.msra.mxu0 %v20
    %100 = vmatprep.subr.mxu0 0.0
    %101 = vmatpush2.msra.mxu0 0.0
    %102 = vmatprep.subr.mxu0 0.0
    %103 = vmatpush2.msra.mxu0 0.0
    %104 = vmatprep.subr.mxu0 0.0
    %105 = vmatpush2.msra.mxu0 0.0
    %106 = vmatprep.subr.mxu0 0.0
    %107 = vmatpush2.msra.mxu0 0.0
    %108 = vmatprep.subr.mxu0 0.0
    %109 = vmatpush2.msra.mxu0 0.0
    %110 = vmatprep.subr.mxu0 0.0
    %111 = vmatpush2.msra.mxu0 0.0
    %112 = vmatprep.subr.mxu0 0.0
    %113 = vmatpush2.msra.mxu0 0.0
    %114 = vmatprep.subr.mxu0 0.0
    %115 = vmatpush2.msra.mxu0 0.0
    %116 = vmatprep.subr.mxu0 0.0
    %117 = vmatpush2.msra.mxu0 0.0
    %118 = vmatprep.subr.mxu0 0.0
    %119 = vmatpush2.msra.mxu0 0.0
    %120 = vmatprep.subr.mxu0 0.0
    %121 = vmatpush2.msra.mxu0 0.0
    %122 = vmatprep.subr.mxu0 0.0
    %123 = vmatpush2.msra.mxu0 0.0
    %124 = vmatprep.subr.mxu0 0.0
    %125 = vmatpush2.msra.mxu0 0.0
    %126 = vmatprep.subr.mxu0 0.0
    %127 = vmatpush2.msra.mxu0 0.0
    %128 = vmatprep.subr.mxu0 0.0
    %129 = vmatpush2.msra.mxu0 0.0
    %130 = vmatprep.subr.mxu0 0.0
    %131 = vmatpush2.msra.mxu0 0.0
    %132 = vmatprep.mubr.f32.mxu0 0.0
    %133 = vmatmul.mubr.f32.gmra.mxu0 %v18
    %v134 = vpop.f32.mrf.mxu0
    %v135 = vadd.f32 0.0, %v134
    %v136 = vpop.f32.mrf.mxu0
    %v137 = vadd.f32 0.0, %v136
    %138 = vmatprep.mubr.f32.mxu0 0.0
    %139 = vmatmul.mubr.f32.gmra.mxu0 %v19
    %v140 = vpop.f32.mrf.mxu0
    %v141 = vadd.f32 0.0, %v140
    %v142 = vpop.f32.mrf.mxu0
    %v143 = vadd.f32 0.0, %v142
    %144 = vdwg.mxu0
    %145 = vmatprep.subr.mxu0 0.0
    %146 = vmatpush1.msra.mxu0 %v67
    %147 = vmatprep.subr.mxu0 0.0
    %148 = vmatpush1.msra.mxu0 %v64
    %149 = vmatprep.subr.mxu0 0.0
    %150 = vmatpush1.msra.mxu0 %v61
    %151 = vmatprep.subr.mxu0 0.0
    %152 = vmatpush1.msra.mxu0 %v58
    %153 = vmatprep.subr.mxu0 0.0
    %154 = vmatpush1.msra.mxu0 %v55
    %155 = vmatprep.subr.mxu0 0.0
    %156 = vmatpush1.msra.mxu0 %v52
    %157 = vmatprep.subr.mxu0 0.0
    %158 = vmatpush1.msra.mxu0 %v49
    %159 = vmatprep.subr.mxu0 0.0
    %160 = vmatpush1.msra.mxu0 %v46
    %161 = vmatprep.subr.mxu0 0.0
    %162 = vmatpush1.msra.mxu0 %v43
    %163 = vmatprep.subr.mxu0 0.0
    %164 = vmatpush1.msra.mxu0 %v40
    %165 = vmatprep.subr.mxu0 0.0
    %166 = vmatpush1.msra.mxu0 %v37
    %167 = vmatprep.subr.mxu0 0.0
    %168 = vmatpush1.msra.mxu0 %v34
    %169 = vmatprep.subr.mxu0 0.0
    %170 = vmatpush1.msra.mxu0 %v31
    %171 = vmatprep.subr.mxu0 0.0
    %172 = vmatpush1.msra.mxu0 %v28
    %173 = vmatprep.subr.mxu0 0.0
    %174 = vmatpush1.msra.mxu0 %v25
    %175 = vmatprep.subr.mxu0 0.0
    %176 = vmatpush1.msra.mxu0 %v22
    %177 = vmatprep.subr.mxu0 0.0
    %178 = vmatpush2.msra.mxu0 0.0
    %179 = vmatprep.subr.mxu0 0.0
    %180 = vmatpush2.msra.mxu0 0.0
    %181 = vmatprep.subr.mxu0 0.0
    %182 = vmatpush2.msra.mxu0 0.0
    %183 = vmatprep.subr.mxu0 0.0
    %184 = vmatpush2.msra.mxu0 0.0
    %185 = vmatprep.subr.mxu0 0.0
    %186 = vmatpush2.msra.mxu0 0.0
    %187 = vmatprep.subr.mxu0 0.0
    %188 = vmatpush2.msra.mxu0 0.0
    %189 = vmatprep.subr.mxu0 0.0
    %190 = vmatpush2.msra.mxu0 0.0
    %191 = vmatprep.subr.mxu0 0.0
    %192 = vmatpush2.msra.mxu0 0.0
    %193 = vmatprep.subr.mxu0 0.0
    %194 = vmatpush2.msra.mxu0 0.0
    %195 = vmatprep.subr.mxu0 0.0
    %196 = vmatpush2.msra.mxu0 0.0
    %197 = vmatprep.subr.mxu0 0.0
    %198 = vmatpush2.msra.mxu0 0.0
    %199 = vmatprep.subr.mxu0 0.0
    %200 = vmatpush2.msra.mxu0 0.0
    %201 = vmatprep.subr.mxu0 0.0
    %202 = vmatpush2.msra.mxu0 0.0
    %203 = vmatprep.subr.mxu0 0.0
    %204 = vmatpush2.msra.mxu0 0.0
    %205 = vmatprep.subr.mxu0 0.0
    %206 = vmatpush2.msra.mxu0 0.0
    %207 = vmatprep.subr.mxu0 0.0
    %208 = vmatpush2.msra.mxu0 0.0
    %209 = vmatprep.mubr.f32.mxu0 0.0
    %210 = vmatmul.mubr.f32.gmra.mxu0 %v18
    %v211 = vpop.f32.mrf.mxu0
    %v212 = vadd.f32 0.0, %v211
    %v213 = vpop.f32.mrf.mxu0
    %214 = vmatprep.mubr.f32.mxu0 0.0
    %215 = vmatmul.mubr.f32.gmra.mxu0 %v19
    %v216 = vpop.f32.mrf.mxu0
    %v217 = vadd.f32 0.0, %v216
    %v218 = vpop.f32.mrf.mxu0
    %219 = vdwg.mxu0
    %v220 = vlaneseq
    %v221 = vshrl.u32 %v220, 7
    %v222 = vlaneseq
    %v223 = vand.u32 %v222, 127
    %vm224 = vcmp.ge.s32.totalorder %v221, %v223
    %vm225 = vcmask 261120
    %v227 = vsel %vm225, %v135, 0
    %v230 = vsel %vm225, %v137, 0
    %232 = vmatprep.subr.mxu0 0.0
    %233 = vmatpush1.xpose.msra.mxu0 0.0
    %234 = vmatprep.subr.mxu0 0.0
    %235 = vmatpush1.xpose.msra.mxu0 0.0
    %236 = vmatprep.subr.mxu0 0.0
    %237 = vmatpush1.xpose.msra.mxu0 0.0
    %238 = vmatprep.subr.mxu0 0.0
    %239 = vmatpush1.xpose.msra.mxu0 0.0
    %240 = vmatprep.subr.mxu0 0.0
    %241 = vmatpush1.xpose.msra.mxu0 0.0
    %242 = vmatprep.subr.mxu0 0.0
    %243 = vmatpush1.xpose.msra.mxu0 0.0
    %244 = vmatprep.subr.mxu0 0.0
    %245 = vmatpush1.xpose.msra.mxu0 0.0
    %246 = vmatprep.subr.mxu0 0.0
    %247 = vmatpush1.xpose.msra.mxu0 0.0
    %248 = vmatprep.subr.mxu0 0.0
    %249 = vmatpush1.xpose.msra.mxu0 0.0
    %250 = vmatprep.subr.mxu0 0.0
    %251 = vmatpush1.xpose.msra.mxu0 0.0
    %252 = vmatprep.subr.mxu0 0.0
    %253 = vmatpush1.xpose.msra.mxu0 0.0
    %254 = vmatprep.subr.mxu0 0.0
    %255 = vmatpush1.xpose.msra.mxu0 0.0
    %256 = vmatprep.subr.mxu0 0.0
    %257 = vmatpush1.xpose.msra.mxu0 0.0
    %258 = vmatprep.subr.mxu0 0.0
    %259 = vmatpush1.xpose.msra.mxu0 0.0
    %260 = vmatprep.subr.mxu0 0.0
    %261 = vmatpush1.xpose.msra.mxu0 0.0
    %262 = vmatprep.subr.mxu0 0.0
    %263 = vmatpush1.xpose.msra.mxu0 %v230
    %264 = vmatprep.subr.mxu0 0.0
    %265 = vmatpush2.xpose.msra.mxu0 0.0
    %266 = vmatprep.subr.mxu0 0.0
    %267 = vmatpush2.xpose.msra.mxu0 0.0
    %268 = vmatprep.subr.mxu0 0.0
    %269 = vmatpush2.xpose.msra.mxu0 0.0
    %270 = vmatprep.subr.mxu0 0.0
    %271 = vmatpush2.xpose.msra.mxu0 0.0
    %272 = vmatprep.subr.mxu0 0.0
    %273 = vmatpush2.xpose.msra.mxu0 0.0
    %274 = vmatprep.subr.mxu0 0.0
    %275 = vmatpush2.xpose.msra.mxu0 0.0
    %276 = vmatprep.subr.mxu0 0.0
    %277 = vmatpush2.xpose.msra.mxu0 0.0
    %278 = vmatprep.subr.mxu0 0.0
    %279 = vmatpush2.xpose.msra.mxu0 0.0
    %280 = vmatprep.subr.mxu0 0.0
    %281 = vmatpush2.xpose.msra.mxu0 0.0
    %282 = vmatprep.subr.mxu0 0.0
    %283 = vmatpush2.xpose.msra.mxu0 0.0
    %284 = vmatprep.subr.mxu0 0.0
    %285 = vmatpush2.xpose.msra.mxu0 0.0
    %286 = vmatprep.subr.mxu0 0.0
    %287 = vmatpush2.xpose.msra.mxu0 0.0
    %288 = vmatprep.subr.mxu0 0.0
    %289 = vmatpush2.xpose.msra.mxu0 0.0
    %290 = vmatprep.subr.mxu0 0.0
    %291 = vmatpush2.xpose.msra.mxu0 0.0
    %292 = vmatprep.subr.mxu0 0.0
    %293 = vmatpush2.xpose.msra.mxu0 0.0
    %294 = vmatprep.subr.mxu0 0.0
    %295 = vmatpush2.xpose.msra.mxu0 0.0
    %296 = vmatprep.mubr.f32.mxu0 0.0
    %297 = vmatmul.mubr.f32.gmra.mxu0 %v227
    %v298 = vpop.f32.mrf.mxu0
    %v299 = vadd.f32 0.0, %v298
    %v300 = vpop.f32.mrf.mxu0
    %301 = vdwg.mxu0
    %v303 = vsel %vm225, %v141, 0
    %v306 = vsel %vm225, %v143, 0
    %308 = vmatprep.subr.mxu0 0.0
    %309 = vmatpush1.xpose.msra.mxu0 0.0
    %310 = vmatprep.subr.mxu0 0.0
    %311 = vmatpush1.xpose.msra.mxu0 0.0
    %312 = vmatprep.subr.mxu0 0.0
    %313 = vmatpush1.xpose.msra.mxu0 0.0
    %314 = vmatprep.subr.mxu0 0.0
    %315 = vmatpush1.xpose.msra.mxu0 0.0
    %316 = vmatprep.subr.mxu0 0.0
    %317 = vmatpush1.xpose.msra.mxu0 0.0
    %318 = vmatprep.subr.mxu0 0.0
    %319 = vmatpush1.xpose.msra.mxu0 0.0
    %320 = vmatprep.subr.mxu0 0.0
    %321 = vmatpush1.xpose.msra.mxu0 0.0
    %322 = vmatprep.subr.mxu0 0.0
    %323 = vmatpush1.xpose.msra.mxu0 0.0
    %324 = vmatprep.subr.mxu0 0.0
    %325 = vmatpush1.xpose.msra.mxu0 0.0
    %326 = vmatprep.subr.mxu0 0.0
    %327 = vmatpush1.xpose.msra.mxu0 0.0
    %328 = vmatprep.subr.mxu0 0.0
    %329 = vmatpush1.xpose.msra.mxu0 0.0
    %330 = vmatprep.subr.mxu0 0.0
    %331 = vmatpush1.xpose.msra.mxu0 0.0
    %332 = vmatprep.subr.mxu0 0.0
    %333 = vmatpush1.xpose.msra.mxu0 0.0
    %334 = vmatprep.subr.mxu0 0.0
    %335 = vmatpush1.xpose.msra.mxu0 0.0
    %336 = vmatprep.subr.mxu0 0.0
    %337 = vmatpush1.xpose.msra.mxu0 0.0
    %338 = vmatprep.subr.mxu0 0.0
    %339 = vmatpush1.xpose.msra.mxu0 %v306
    %340 = vmatprep.subr.mxu0 0.0
    %341 = vmatpush2.xpose.msra.mxu0 0.0
    %342 = vmatprep.subr.mxu0 0.0
    %343 = vmatpush2.xpose.msra.mxu0 0.0
    %344 = vmatprep.subr.mxu0 0.0
    %345 = vmatpush2.xpose.msra.mxu0 0.0
    %346 = vmatprep.subr.mxu0 0.0
    %347 = vmatpush2.xpose.msra.mxu0 0.0
    %348 = vmatprep.subr.mxu0 0.0
    %349 = vmatpush2.xpose.msra.mxu0 0.0
    %350 = vmatprep.subr.mxu0 0.0
    %351 = vmatpush2.xpose.msra.mxu0 0.0
    %352 = vmatprep.subr.mxu0 0.0
    %353 = vmatpush2.xpose.msra.mxu0 0.0
    %354 = vmatprep.subr.mxu0 0.0
    %355 = vmatpush2.xpose.msra.mxu0 0.0
    %356 = vmatprep.subr.mxu0 0.0
    %357 = vmatpush2.xpose.msra.mxu0 0.0
    %358 = vmatprep.subr.mxu0 0.0
    %359 = vmatpush2.xpose.msra.mxu0 0.0
    %360 = vmatprep.subr.mxu0 0.0
    %361 = vmatpush2.xpose.msra.mxu0 0.0
    %362 = vmatprep.subr.mxu0 0.0
    %363 = vmatpush2.xpose.msra.mxu0 0.0
    %364 = vmatprep.subr.mxu0 0.0
    %365 = vmatpush2.xpose.msra.mxu0 0.0
    %366 = vmatprep.subr.mxu0 0.0
    %367 = vmatpush2.xpose.msra.mxu0 0.0
    %368 = vmatprep.subr.mxu0 0.0
    %369 = vmatpush2.xpose.msra.mxu0 0.0
    %370 = vmatprep.subr.mxu0 0.0
    %371 = vmatpush2.xpose.msra.mxu0 0.0
    %372 = vmatprep.mubr.f32.mxu0 0.0
    %373 = vmatmul.mubr.f32.gmra.mxu0 %v303
    %v374 = vpop.f32.mrf.mxu0
    %v375 = vadd.f32 0.0, %v374
    %v376 = vpop.f32.mrf.mxu0
    %377 = vdwg.mxu0
    %v378 = vmul.f32 %v299, 0.088388346
    %v379 = vmul.f32 %v375, 0.088388346
    %v380 = vsel %vm224, 1, 0
    %vm381 = vcmp.eq.s32.totalorder %v380, 1
    %v382 = vsel %vm381, %v378, -1e+30
    %v383 = vsel %vm381, %v379, -1e+30
    %vm384 = vcmask 64512
    %v385 = vsel %vm384, %v382, -inf
    %386 = vmax.xlane.f32.xlu0 %v385
    %v387 = vpop.xlane.xlu0 %386
    %v388 = vsel %vm384, %v383, -inf
    %389 = vmax.xlane.f32.xlu0 %v388
    %v390 = vpop.xlane.xlu0 %389
    %v391 = vsub.f32 %v382, %v387
    %v392 = vsub.f32 %v383, %v390
    %v393 = vmul.f32 %v391, 1.442695
    %v394 = vpow.pop %v393
    %v395 = vmul.f32 %v392, 1.442695
    %v396 = vpow.pop %v395
    %v397 = vsel %vm384, %v394, 0.0
    %398 = vadd.xlane.f32.xlu0 %v397
    %v399 = vpop.xlane.xlu0 %398
    %v400 = vsel %vm384, %v396, 0.0
    %401 = vadd.xlane.f32.xlu0 %v400
    %v402 = vpop.xlane.xlu0 %401
    %v403 = vrcp.pop %v399
    %v404 = vrcp.pop %v402
    %v405 = vmul.f32 %v394, %v403
    %v406 = vmul.f32 %v396, %v404
    %v408 = vsel %vm384, %v405, 0
    %410 = vmatprep.subr.mxu0 0.0
    %411 = vmatpush1.msra.mxu0 0.0
    %412 = vmatprep.subr.mxu0 0.0
    %413 = vmatpush1.msra.mxu0 0.0
    %414 = vmatprep.subr.mxu0 0.0
    %415 = vmatpush1.msra.mxu0 0.0
    %416 = vmatprep.subr.mxu0 0.0
    %417 = vmatpush1.msra.mxu0 0.0
    %418 = vmatprep.subr.mxu0 0.0
    %419 = vmatpush1.msra.mxu0 0.0
    %420 = vmatprep.subr.mxu0 0.0
    %421 = vmatpush1.msra.mxu0 0.0
    %422 = vmatprep.subr.mxu0 0.0
    %423 = vmatpush1.msra.mxu0 0.0
    %424 = vmatprep.subr.mxu0 0.0
    %425 = vmatpush1.msra.mxu0 0.0
    %426 = vmatprep.subr.mxu0 0.0
    %427 = vmatpush1.msra.mxu0 0.0
    %428 = vmatprep.subr.mxu0 0.0
    %429 = vmatpush1.msra.mxu0 0.0
    %430 = vmatprep.subr.mxu0 0.0
    %431 = vmatpush1.msra.mxu0 0.0
    %432 = vmatprep.subr.mxu0 0.0
    %433 = vmatpush1.msra.mxu0 0.0
    %434 = vmatprep.subr.mxu0 0.0
    %435 = vmatpush1.msra.mxu0 0.0
    %436 = vmatprep.subr.mxu0 0.0
    %437 = vmatpush1.msra.mxu0 0.0
    %438 = vmatprep.subr.mxu0 0.0
    %439 = vmatpush1.msra.mxu0 0.0
    %440 = vmatprep.subr.mxu0 0.0
    %441 = vmatpush1.msra.mxu0 %v212
    %442 = vmatprep.subr.mxu0 0.0
    %443 = vmatpush2.msra.mxu0 0.0
    %444 = vmatprep.subr.mxu0 0.0
    %445 = vmatpush2.msra.mxu0 0.0
    %446 = vmatprep.subr.mxu0 0.0
    %447 = vmatpush2.msra.mxu0 0.0
    %448 = vmatprep.subr.mxu0 0.0
    %449 = vmatpush2.msra.mxu0 0.0
    %450 = vmatprep.subr.mxu0 0.0
    %451 = vmatpush2.msra.mxu0 0.0
    %452 = vmatprep.subr.mxu0 0.0
    %453 = vmatpush2.msra.mxu0 0.0
    %454 = vmatprep.subr.mxu0 0.0
    %455 = vmatpush2.msra.mxu0 0.0
    %456 = vmatprep.subr.mxu0 0.0
    %457 = vmatpush2.msra.mxu0 0.0
    %458 = vmatprep.subr.mxu0 0.0
    %459 = vmatpush2.msra.mxu0 0.0
    %460 = vmatprep.subr.mxu0 0.0
    %461 = vmatpush2.msra.mxu0 0.0
    %462 = vmatprep.subr.mxu0 0.0
    %463 = vmatpush2.msra.mxu0 0.0
    %464 = vmatprep.subr.mxu0 0.0
    %465 = vmatpush2.msra.mxu0 0.0
    %466 = vmatprep.subr.mxu0 0.0
    %467 = vmatpush2.msra.mxu0 0.0
    %468 = vmatprep.subr.mxu0 0.0
    %469 = vmatpush2.msra.mxu0 0.0
    %470 = vmatprep.subr.mxu0 0.0
    %471 = vmatpush2.msra.mxu0 0.0
    %472 = vmatprep.subr.mxu0 0.0
    %473 = vmatpush2.msra.mxu0 0.0
    %474 = vmatprep.mubr.f32.mxu0 0.0
    %475 = vmatmul.mubr.f32.gmra.mxu0 %v408
    %v476 = vpop.f32.mrf.mxu0
    %v477 = vadd.f32 0.0, %v476
    %v478 = vpop.f32.mrf.mxu0
    %479 = vdwg.mxu0
    %v481 = vsel %vm384, %v406, 0
    %483 = vmatprep.subr.mxu0 0.0
    %484 = vmatpush1.msra.mxu0 0.0
    %485 = vmatprep.subr.mxu0 0.0
    %486 = vmatpush1.msra.mxu0 0.0
    %487 = vmatprep.subr.mxu0 0.0
    %488 = vmatpush1.msra.mxu0 0.0
    %489 = vmatprep.subr.mxu0 0.0
    %490 = vmatpush1.msra.mxu0 0.0
    %491 = vmatprep.subr.mxu0 0.0
    %492 = vmatpush1.msra.mxu0 0.0
    %493 = vmatprep.subr.mxu0 0.0
    %494 = vmatpush1.msra.mxu0 0.0
    %495 = vmatprep.subr.mxu0 0.0
    %496 = vmatpush1.msra.mxu0 0.0
    %497 = vmatprep.subr.mxu0 0.0
    %498 = vmatpush1.msra.mxu0 0.0
    %499 = vmatprep.subr.mxu0 0.0
    %500 = vmatpush1.msra.mxu0 0.0
    %501 = vmatprep.subr.mxu0 0.0
    %502 = vmatpush1.msra.mxu0 0.0
    %503 = vmatprep.subr.mxu0 0.0
    %504 = vmatpush1.msra.mxu0 0.0
    %505 = vmatprep.subr.mxu0 0.0
    %506 = vmatpush1.msra.mxu0 0.0
    %507 = vmatprep.subr.mxu0 0.0
    %508 = vmatpush1.msra.mxu0 0.0
    %509 = vmatprep.subr.mxu0 0.0
    %510 = vmatpush1.msra.mxu0 0.0
    %511 = vmatprep.subr.mxu0 0.0
    %512 = vmatpush1.msra.mxu0 0.0
    %513 = vmatprep.subr.mxu0 0.0
    %514 = vmatpush1.msra.mxu0 %v217
    %515 = vmatprep.subr.mxu0 0.0
    %516 = vmatpush2.msra.mxu0 0.0
    %517 = vmatprep.subr.mxu0 0.0
    %518 = vmatpush2.msra.mxu0 0.0
    %519 = vmatprep.subr.mxu0 0.0
    %520 = vmatpush2.msra.mxu0 0.0
    %521 = vmatprep.subr.mxu0 0.0
    %522 = vmatpush2.msra.mxu0 0.0
    %523 = vmatprep.subr.mxu0 0.0
    %524 = vmatpush2.msra.mxu0 0.0
    %525 = vmatprep.subr.mxu0 0.0
    %526 = vmatpush2.msra.mxu0 0.0
    %527 = vmatprep.subr.mxu0 0.0
    %528 = vmatpush2.msra.mxu0 0.0
    %529 = vmatprep.subr.mxu0 0.0
    %530 = vmatpush2.msra.mxu0 0.0
    %531 = vmatprep.subr.mxu0 0.0
    %532 = vmatpush2.msra.mxu0 0.0
    %533 = vmatprep.subr.mxu0 0.0
    %534 = vmatpush2.msra.mxu0 0.0
    %535 = vmatprep.subr.mxu0 0.0
    %536 = vmatpush2.msra.mxu0 0.0
    %537 = vmatprep.subr.mxu0 0.0
    %538 = vmatpush2.msra.mxu0 0.0
    %539 = vmatprep.subr.mxu0 0.0
    %540 = vmatpush2.msra.mxu0 0.0
    %541 = vmatprep.subr.mxu0 0.0
    %542 = vmatpush2.msra.mxu0 0.0
    %543 = vmatprep.subr.mxu0 0.0
    %544 = vmatpush2.msra.mxu0 0.0
    %545 = vmatprep.subr.mxu0 0.0
    %546 = vmatpush2.msra.mxu0 0.0
    %547 = vmatprep.mubr.f32.mxu0 0.0
    %548 = vmatmul.mubr.f32.gmra.mxu0 %v481
    %v549 = vpop.f32.mrf.mxu0
    %v550 = vadd.f32 0.0, %v549
    %v551 = vpop.f32.mrf.mxu0
    %552 = vdwg.mxu0
    %553 = vrot.lane.b32.xlu0 %v135, 96
    %v554 = vpop.permute.xlu0 %553
    %555 = vrot.lane.b32.xlu0 %v137, 96
    %v556 = vpop.permute.xlu0 %555
    %v557 = vsel %vm225, %v554, 0
    %v559 = vsel %vm225, %v556, 0
    %561 = vmatprep.subr.mxu0 0.0
    %562 = vmatpush1.xpose.msra.mxu0 0.0
    %563 = vmatprep.subr.mxu0 0.0
    %564 = vmatpush1.xpose.msra.mxu0 0.0
    %565 = vmatprep.subr.mxu0 0.0
    %566 = vmatpush1.xpose.msra.mxu0 0.0
    %567 = vmatprep.subr.mxu0 0.0
    %568 = vmatpush1.xpose.msra.mxu0 0.0
    %569 = vmatprep.subr.mxu0 0.0
    %570 = vmatpush1.xpose.msra.mxu0 0.0
    %571 = vmatprep.subr.mxu0 0.0
    %572 = vmatpush1.xpose.msra.mxu0 0.0
    %573 = vmatprep.subr.mxu0 0.0
    %574 = vmatpush1.xpose.msra.mxu0 0.0
    %575 = vmatprep.subr.mxu0 0.0
    %576 = vmatpush1.xpose.msra.mxu0 0.0
    %577 = vmatprep.subr.mxu0 0.0
    %578 = vmatpush1.xpose.msra.mxu0 0.0
    %579 = vmatprep.subr.mxu0 0.0
    %580 = vmatpush1.xpose.msra.mxu0 0.0
    %581 = vmatprep.subr.mxu0 0.0
    %582 = vmatpush1.xpose.msra.mxu0 0.0
    %583 = vmatprep.subr.mxu0 0.0
    %584 = vmatpush1.xpose.msra.mxu0 0.0
    %585 = vmatprep.subr.mxu0 0.0
    %586 = vmatpush1.xpose.msra.mxu0 0.0
    %587 = vmatprep.subr.mxu0 0.0
    %588 = vmatpush1.xpose.msra.mxu0 0.0
    %589 = vmatprep.subr.mxu0 0.0
    %590 = vmatpush1.xpose.msra.mxu0 0.0
    %591 = vmatprep.subr.mxu0 0.0
    %592 = vmatpush1.xpose.msra.mxu0 %v559
    %593 = vmatprep.subr.mxu0 0.0
    %594 = vmatpush2.xpose.msra.mxu0 0.0
    %595 = vmatprep.subr.mxu0 0.0
    %596 = vmatpush2.xpose.msra.mxu0 0.0
    %597 = vmatprep.subr.mxu0 0.0
    %598 = vmatpush2.xpose.msra.mxu0 0.0
    %599 = vmatprep.subr.mxu0 0.0
    %600 = vmatpush2.xpose.msra.mxu0 0.0
    %601 = vmatprep.subr.mxu0 0.0
    %602 = vmatpush2.xpose.msra.mxu0 0.0
    %603 = vmatprep.subr.mxu0 0.0
    %604 = vmatpush2.xpose.msra.mxu0 0.0
    %605 = vmatprep.subr.mxu0 0.0
    %606 = vmatpush2.xpose.msra.mxu0 0.0
    %607 = vmatprep.subr.mxu0 0.0
    %608 = vmatpush2.xpose.msra.mxu0 0.0
    %609 = vmatprep.subr.mxu0 0.0
    %610 = vmatpush2.xpose.msra.mxu0 0.0
    %611 = vmatprep.subr.mxu0 0.0
    %612 = vmatpush2.xpose.msra.mxu0 0.0
    %613 = vmatprep.subr.mxu0 0.0
    %614 = vmatpush2.xpose.msra.mxu0 0.0
    %615 = vmatprep.subr.mxu0 0.0
    %616 = vmatpush2.xpose.msra.mxu0 0.0
    %617 = vmatprep.subr.mxu0 0.0
    %618 = vmatpush2.xpose.msra.mxu0 0.0
    %619 = vmatprep.subr.mxu0 0.0
    %620 = vmatpush2.xpose.msra.mxu0 0.0
    %621 = vmatprep.subr.mxu0 0.0
    %622 = vmatpush2.xpose.msra.mxu0 0.0
    %623 = vmatprep.subr.mxu0 0.0
    %624 = vmatpush2.xpose.msra.mxu0 0.0
    %625 = vmatprep.mubr.f32.mxu0 0.0
    %626 = vmatmul.mubr.f32.gmra.mxu0 %v557
    %v627 = vpop.f32.mrf.mxu0
    %v628 = vadd.f32 0.0, %v627
    %v629 = vpop.f32.mrf.mxu0
    %630 = vdwg.mxu0
    %631 = vrot.lane.b32.xlu0 %v141, 96
    %v632 = vpop.permute.xlu0 %631
    %633 = vrot.lane.b32.xlu0 %v143, 96
    %v634 = vpop.permute.xlu0 %633
    %v635 = vsel %vm225, %v632, 0
    %v637 = vsel %vm225, %v634, 0
    %639 = vmatprep.subr.mxu0 0.0
    %640 = vmatpush1.xpose.msra.mxu0 0.0
    %641 = vmatprep.subr.mxu0 0.0
    %642 = vmatpush1.xpose.msra.mxu0 0.0
    %643 = vmatprep.subr.mxu0 0.0
    %644 = vmatpush1.xpose.msra.mxu0 0.0
    %645 = vmatprep.subr.mxu0 0.0
    %646 = vmatpush1.xpose.msra.mxu0 0.0
    %647 = vmatprep.subr.mxu0 0.0
    %648 = vmatpush1.xpose.msra.mxu0 0.0
    %649 = vmatprep.subr.mxu0 0.0
    %650 = vmatpush1.xpose.msra.mxu0 0.0
    %651 = vmatprep.subr.mxu0 0.0
    %652 = vmatpush1.xpose.msra.mxu0 0.0
    %653 = vmatprep.subr.mxu0 0.0
    %654 = vmatpush1.xpose.msra.mxu0 0.0
    %655 = vmatprep.subr.mxu0 0.0
    %656 = vmatpush1.xpose.msra.mxu0 0.0
    %657 = vmatprep.subr.mxu0 0.0
    %658 = vmatpush1.xpose.msra.mxu0 0.0
    %659 = vmatprep.subr.mxu0 0.0
    %660 = vmatpush1.xpose.msra.mxu0 0.0
    %661 = vmatprep.subr.mxu0 0.0
    %662 = vmatpush1.xpose.msra.mxu0 0.0
    %663 = vmatprep.subr.mxu0 0.0
    %664 = vmatpush1.xpose.msra.mxu0 0.0
    %665 = vmatprep.subr.mxu0 0.0
    %666 = vmatpush1.xpose.msra.mxu0 0.0
    %667 = vmatprep.subr.mxu0 0.0
    %668 = vmatpush1.xpose.msra.mxu0 0.0
    %669 = vmatprep.subr.mxu0 0.0
    %670 = vmatpush1.xpose.msra.mxu0 %v637
    %671 = vmatprep.subr.mxu0 0.0
    %672 = vmatpush2.xpose.msra.mxu0 0.0
    %673 = vmatprep.subr.mxu0 0.0
    %674 = vmatpush2.xpose.msra.mxu0 0.0
    %675 = vmatprep.subr.mxu0 0.0
    %676 = vmatpush2.xpose.msra.mxu0 0.0
    %677 = vmatprep.subr.mxu0 0.0
    %678 = vmatpush2.xpose.msra.mxu0 0.0
    %679 = vmatprep.subr.mxu0 0.0
    %680 = vmatpush2.xpose.msra.mxu0 0.0
    %681 = vmatprep.subr.mxu0 0.0
    %682 = vmatpush2.xpose.msra.mxu0 0.0
    %683 = vmatprep.subr.mxu0 0.0
    %684 = vmatpush2.xpose.msra.mxu0 0.0
    %685 = vmatprep.subr.mxu0 0.0
    %686 = vmatpush2.xpose.msra.mxu0 0.0
    %687 = vmatprep.subr.mxu0 0.0
    %688 = vmatpush2.xpose.msra.mxu0 0.0
    %689 = vmatprep.subr.mxu0 0.0
    %690 = vmatpush2.xpose.msra.mxu0 0.0
    %691 = vmatprep.subr.mxu0 0.0
    %692 = vmatpush2.xpose.msra.mxu0 0.0
    %693 = vmatprep.subr.mxu0 0.0
    %694 = vmatpush2.xpose.msra.mxu0 0.0
    %695 = vmatprep.subr.mxu0 0.0
    %696 = vmatpush2.xpose.msra.mxu0 0.0
    %697 = vmatprep.subr.mxu0 0.0
    %698 = vmatpush2.xpose.msra.mxu0 0.0
    %699 = vmatprep.subr.mxu0 0.0
    %700 = vmatpush2.xpose.msra.mxu0 0.0
    %701 = vmatprep.subr.mxu0 0.0
    %702 = vmatpush2.xpose.msra.mxu0 0.0
    %703 = vmatprep.mubr.f32.mxu0 0.0
    %704 = vmatmul.mubr.f32.gmra.mxu0 %v635
    %v705 = vpop.f32.mrf.mxu0
    %v706 = vadd.f32 0.0, %v705
    %v707 = vpop.f32.mrf.mxu0
    %708 = vdwg.mxu0
    %v709 = vmul.f32 %v628, 0.088388346
    %v710 = vmul.f32 %v706, 0.088388346
    %v711 = vsel %vm381, %v709, -1e+30
    %v712 = vsel %vm381, %v710, -1e+30
    %v713 = vsel %vm384, %v711, -inf
    %714 = vmax.xlane.f32.xlu0 %v713
    %v715 = vpop.xlane.xlu0 %714
    %v716 = vsel %vm384, %v712, -inf
    %717 = vmax.xlane.f32.xlu0 %v716
    %v718 = vpop.xlane.xlu0 %717
    %v719 = vsub.f32 %v711, %v715
    %v720 = vsub.f32 %v712, %v718
    %v721 = vmul.f32 %v719, 1.442695
    %v722 = vpow.pop %v721
    %v723 = vmul.f32 %v720, 1.442695
    %v724 = vpow.pop %v723
    %v725 = vsel %vm384, %v722, 0.0
    %726 = vadd.xlane.f32.xlu0 %v725
    %v727 = vpop.xlane.xlu0 %726
    %v728 = vsel %vm384, %v724, 0.0
    %729 = vadd.xlane.f32.xlu0 %v728
    %v730 = vpop.xlane.xlu0 %729
    %v731 = vrcp.pop %v727
    %v732 = vrcp.pop %v730
    %v733 = vmul.f32 %v722, %v731
    %v734 = vmul.f32 %v724, %v732
    %736 = vrot.lane.b32.xlu0 %v212, 96
    %v737 = vpop.permute.xlu0 %736
    %v740 = vsel %vm384, %v733, 0
    %742 = vmatprep.subr.mxu0 0.0
    %743 = vmatpush1.msra.mxu0 0.0
    %744 = vmatprep.subr.mxu0 0.0
    %745 = vmatpush1.msra.mxu0 0.0
    %746 = vmatprep.subr.mxu0 0.0
    %747 = vmatpush1.msra.mxu0 0.0
    %748 = vmatprep.subr.mxu0 0.0
    %749 = vmatpush1.msra.mxu0 0.0
    %750 = vmatprep.subr.mxu0 0.0
    %751 = vmatpush1.msra.mxu0 0.0
    %752 = vmatprep.subr.mxu0 0.0
    %753 = vmatpush1.msra.mxu0 0.0
    %754 = vmatprep.subr.mxu0 0.0
    %755 = vmatpush1.msra.mxu0 0.0
    %756 = vmatprep.subr.mxu0 0.0
    %757 = vmatpush1.msra.mxu0 0.0
    %758 = vmatprep.subr.mxu0 0.0
    %759 = vmatpush1.msra.mxu0 0.0
    %760 = vmatprep.subr.mxu0 0.0
    %761 = vmatpush1.msra.mxu0 0.0
    %762 = vmatprep.subr.mxu0 0.0
    %763 = vmatpush1.msra.mxu0 0.0
    %764 = vmatprep.subr.mxu0 0.0
    %765 = vmatpush1.msra.mxu0 0.0
    %766 = vmatprep.subr.mxu0 0.0
    %767 = vmatpush1.msra.mxu0 0.0
    %768 = vmatprep.subr.mxu0 0.0
    %769 = vmatpush1.msra.mxu0 0.0
    %770 = vmatprep.subr.mxu0 0.0
    %771 = vmatpush1.msra.mxu0 0.0
    %772 = vmatprep.subr.mxu0 0.0
    %773 = vmatpush1.msra.mxu0 %v737
    %774 = vmatprep.subr.mxu0 0.0
    %775 = vmatpush2.msra.mxu0 0.0
    %776 = vmatprep.subr.mxu0 0.0
    %777 = vmatpush2.msra.mxu0 0.0
    %778 = vmatprep.subr.mxu0 0.0
    %779 = vmatpush2.msra.mxu0 0.0
    %780 = vmatprep.subr.mxu0 0.0
    %781 = vmatpush2.msra.mxu0 0.0
    %782 = vmatprep.subr.mxu0 0.0
    %783 = vmatpush2.msra.mxu0 0.0
    %784 = vmatprep.subr.mxu0 0.0
    %785 = vmatpush2.msra.mxu0 0.0
    %786 = vmatprep.subr.mxu0 0.0
    %787 = vmatpush2.msra.mxu0 0.0
    %788 = vmatprep.subr.mxu0 0.0
    %789 = vmatpush2.msra.mxu0 0.0
    %790 = vmatprep.subr.mxu0 0.0
    %791 = vmatpush2.msra.mxu0 0.0
    %792 = vmatprep.subr.mxu0 0.0
    %793 = vmatpush2.msra.mxu0 0.0
    %794 = vmatprep.subr.mxu0 0.0
    %795 = vmatpush2.msra.mxu0 0.0
    %796 = vmatprep.subr.mxu0 0.0
    %797 = vmatpush2.msra.mxu0 0.0
    %798 = vmatprep.subr.mxu0 0.0
    %799 = vmatpush2.msra.mxu0 0.0
    %800 = vmatprep.subr.mxu0 0.0
    %801 = vmatpush2.msra.mxu0 0.0
    %802 = vmatprep.subr.mxu0 0.0
    %803 = vmatpush2.msra.mxu0 0.0
    %804 = vmatprep.subr.mxu0 0.0
    %805 = vmatpush2.msra.mxu0 0.0
    %806 = vmatprep.mubr.f32.mxu0 0.0
    %807 = vmatmul.mubr.f32.gmra.mxu0 %v740
    %v808 = vpop.f32.mrf.mxu0
    %v809 = vadd.f32 0.0, %v808
    %v810 = vpop.f32.mrf.mxu0
    %811 = vdwg.mxu0
    %813 = vrot.lane.b32.xlu0 %v217, 96
    %v814 = vpop.permute.xlu0 %813
    %v817 = vsel %vm384, %v734, 0
    %819 = vmatprep.subr.mxu0 0.0
    %820 = vmatpush1.msra.mxu0 0.0
    %821 = vmatprep.subr.mxu0 0.0
    %822 = vmatpush1.msra.mxu0 0.0
    %823 = vmatprep.subr.mxu0 0.0
    %824 = vmatpush1.msra.mxu0 0.0
    %825 = vmatprep.subr.mxu0 0.0
    %826 = vmatpush1.msra.mxu0 0.0
    %827 = vmatprep.subr.mxu0 0.0
    %828 = vmatpush1.msra.mxu0 0.0
    %829 = vmatprep.subr.mxu0 0.0
    %830 = vmatpush1.msra.mxu0 0.0
    %831 = vmatprep.subr.mxu0 0.0
    %832 = vmatpush1.msra.mxu0 0.0
    %833 = vmatprep.subr.mxu0 0.0
    %834 = vmatpush1.msra.mxu0 0.0
    %835 = vmatprep.subr.mxu0 0.0
    %836 = vmatpush1.msra.mxu0 0.0
    %837 = vmatprep.subr.mxu0 0.0
    %838 = vmatpush1.msra.mxu0 0.0
    %839 = vmatprep.subr.mxu0 0.0
    %840 = vmatpush1.msra.mxu0 0.0
    %841 = vmatprep.subr.mxu0 0.0
    %842 = vmatpush1.msra.mxu0 0.0
    %843 = vmatprep.subr.mxu0 0.0
    %844 = vmatpush1.msra.mxu0 0.0
    %845 = vmatprep.subr.mxu0 0.0
    %846 = vmatpush1.msra.mxu0 0.0
    %847 = vmatprep.subr.mxu0 0.0
    %848 = vmatpush1.msra.mxu0 0.0
    %849 = vmatprep.subr.mxu0 0.0
    %850 = vmatpush1.msra.mxu0 %v814
    %851 = vmatprep.subr.mxu0 0.0
    %852 = vmatpush2.msra.mxu0 0.0
    %853 = vmatprep.subr.mxu0 0.0
    %854 = vmatpush2.msra.mxu0 0.0
    %855 = vmatprep.subr.mxu0 0.0
    %856 = vmatpush2.msra.mxu0 0.0
    %857 = vmatprep.subr.mxu0 0.0
    %858 = vmatpush2.msra.mxu0 0.0
    %859 = vmatprep.subr.mxu0 0.0
    %860 = vmatpush2.msra.mxu0 0.0
    %861 = vmatprep.subr.mxu0 0.0
    %862 = vmatpush2.msra.mxu0 0.0
    %863 = vmatprep.subr.mxu0 0.0
    %864 = vmatpush2.msra.mxu0 0.0
    %865 = vmatprep.subr.mxu0 0.0
    %866 = vmatpush2.msra.mxu0 0.0
    %867 = vmatprep.subr.mxu0 0.0
    %868 = vmatpush2.msra.mxu0 0.0
    %869 = vmatprep.subr.mxu0 0.0
    %870 = vmatpush2.msra.mxu0 0.0
    %871 = vmatprep.subr.mxu0 0.0
    %872 = vmatpush2.msra.mxu0 0.0
    %873 = vmatprep.subr.mxu0 0.0
    %874 = vmatpush2.msra.mxu0 0.0
    %875 = vmatprep.subr.mxu0 0.0
    %876 = vmatpush2.msra.mxu0 0.0
    %877 = vmatprep.subr.mxu0 0.0
    %878 = vmatpush2.msra.mxu0 0.0
    %879 = vmatprep.subr.mxu0 0.0
    %880 = vmatpush2.msra.mxu0 0.0
    %881 = vmatprep.subr.mxu0 0.0
    %882 = vmatpush2.msra.mxu0 0.0
    %883 = vmatprep.mubr.f32.mxu0 0.0
    %884 = vmatmul.mubr.f32.gmra.mxu0 %v817
    %v885 = vpop.f32.mrf.mxu0
    %v886 = vadd.f32 0.0, %v885
    %v887 = vpop.f32.mrf.mxu0
    %888 = vdwg.mxu0
    %889 = vrot.lane.b32.xlu0 %v135, 64
    %v890 = vpop.permute.xlu0 %889
    %891 = vrot.lane.b32.xlu0 %v137, 64
    %v892 = vpop.permute.xlu0 %891
    %v893 = vsel %vm225, %v890, 0
    %v895 = vsel %vm225, %v892, 0
    %897 = vmatprep.subr.mxu0 0.0
    %898 = vmatpush1.xpose.msra.mxu0 0.0
    %899 = vmatprep.subr.mxu0 0.0
    %900 = vmatpush1.xpose.msra.mxu0 0.0
    %901 = vmatprep.subr.mxu0 0.0
    %902 = vmatpush1.xpose.msra.mxu0 0.0
    %903 = vmatprep.subr.mxu0 0.0
    %904 = vmatpush1.xpose.msra.mxu0 0.0
    %905 = vmatprep.subr.mxu0 0.0
    %906 = vmatpush1.xpose.msra.mxu0 0.0
    %907 = vmatprep.subr.mxu0 0.0
    %908 = vmatpush1.xpose.msra.mxu0 0.0
    %909 = vmatprep.subr.mxu0 0.0
    %910 = vmatpush1.xpose.msra.mxu0 0.0
    %911 = vmatprep.subr.mxu0 0.0
    %912 = vmatpush1.xpose.msra.mxu0 0.0
    %913 = vmatprep.subr.mxu0 0.0
    %914 = vmatpush1.xpose.msra.mxu0 0.0
    %915 = vmatprep.subr.mxu0 0.0
    %916 = vmatpush1.xpose.msra.mxu0 0.0
    %917 = vmatprep.subr.mxu0 0.0
    %918 = vmatpush1.xpose.msra.mxu0 0.0
    %919 = vmatprep.subr.mxu0 0.0
    %920 = vmatpush1.xpose.msra.mxu0 0.0
    %921 = vmatprep.subr.mxu0 0.0
    %922 = vmatpush1.xpose.msra.mxu0 0.0
    %923 = vmatprep.subr.mxu0 0.0
    %924 = vmatpush1.xpose.msra.mxu0 0.0
    %925 = vmatprep.subr.mxu0 0.0
    %926 = vmatpush1.xpose.msra.mxu0 0.0
    %927 = vmatprep.subr.mxu0 0.0
    %928 = vmatpush1.xpose.msra.mxu0 %v895
    %929 = vmatprep.subr.mxu0 0.0
    %930 = vmatpush2.xpose.msra.mxu0 0.0
    %931 = vmatprep.subr.mxu0 0.0
    %932 = vmatpush2.xpose.msra.mxu0 0.0
    %933 = vmatprep.subr.mxu0 0.0
    %934 = vmatpush2.xpose.msra.mxu0 0.0
    %935 = vmatprep.subr.mxu0 0.0
    %936 = vmatpush2.xpose.msra.mxu0 0.0
    %937 = vmatprep.subr.mxu0 0.0
    %938 = vmatpush2.xpose.msra.mxu0 0.0
    %939 = vmatprep.subr.mxu0 0.0
    %940 = vmatpush2.xpose.msra.mxu0 0.0
    %941 = vmatprep.subr.mxu0 0.0
    %942 = vmatpush2.xpose.msra.mxu0 0.0
    %943 = vmatprep.subr.mxu0 0.0
    %944 = vmatpush2.xpose.msra.mxu0 0.0
    %945 = vmatprep.subr.mxu0 0.0
    %946 = vmatpush2.xpose.msra.mxu0 0.0
    %947 = vmatprep.subr.mxu0 0.0
    %948 = vmatpush2.xpose.msra.mxu0 0.0
    %949 = vmatprep.subr.mxu0 0.0
    %950 = vmatpush2.xpose.msra.mxu0 0.0
    %951 = vmatprep.subr.mxu0 0.0
    %952 = vmatpush2.xpose.msra.mxu0 0.0
    %953 = vmatprep.subr.mxu0 0.0
    %954 = vmatpush2.xpose.msra.mxu0 0.0
    %955 = vmatprep.subr.mxu0 0.0
    %956 = vmatpush2.xpose.msra.mxu0 0.0
    %957 = vmatprep.subr.mxu0 0.0
    %958 = vmatpush2.xpose.msra.mxu0 0.0
    %959 = vmatprep.subr.mxu0 0.0
    %960 = vmatpush2.xpose.msra.mxu0 0.0
    %961 = vmatprep.mubr.f32.mxu0 0.0
    %962 = vmatmul.mubr.f32.gmra.mxu0 %v893
    %v963 = vpop.f32.mrf.mxu0
    %v964 = vadd.f32 0.0, %v963
    %v965 = vpop.f32.mrf.mxu0
    %966 = vdwg.mxu0
    %967 = vrot.lane.b32.xlu0 %v141, 64
    %v968 = vpop.permute.xlu0 %967
    %969 = vrot.lane.b32.xlu0 %v143, 64
    %v970 = vpop.permute.xlu0 %969
    %v971 = vsel %vm225, %v968, 0
    %v973 = vsel %vm225, %v970, 0
    %975 = vmatprep.subr.mxu0 0.0
    %976 = vmatpush1.xpose.msra.mxu0 0.0
    %977 = vmatprep.subr.mxu0 0.0
    %978 = vmatpush1.xpose.msra.mxu0 0.0
    %979 = vmatprep.subr.mxu0 0.0
    %980 = vmatpush1.xpose.msra.mxu0 0.0
    %981 = vmatprep.subr.mxu0 0.0
    %982 = vmatpush1.xpose.msra.mxu0 0.0
    %983 = vmatprep.subr.mxu0 0.0
    %984 = vmatpush1.xpose.msra.mxu0 0.0
    %985 = vmatprep.subr.mxu0 0.0
    %986 = vmatpush1.xpose.msra.mxu0 0.0
    %987 = vmatprep.subr.mxu0 0.0
    %988 = vmatpush1.xpose.msra.mxu0 0.0
    %989 = vmatprep.subr.mxu0 0.0
    %990 = vmatpush1.xpose.msra.mxu0 0.0
    %991 = vmatprep.subr.mxu0 0.0
    %992 = vmatpush1.xpose.msra.mxu0 0.0
    %993 = vmatprep.subr.mxu0 0.0
    %994 = vmatpush1.xpose.msra.mxu0 0.0
    %995 = vmatprep.subr.mxu0 0.0
    %996 = vmatpush1.xpose.msra.mxu0 0.0
    %997 = vmatprep.subr.mxu0 0.0
    %998 = vmatpush1.xpose.msra.mxu0 0.0
    %999 = vmatprep.subr.mxu0 0.0
    %1000 = vmatpush1.xpose.msra.mxu0 0.0
    %1001 = vmatprep.subr.mxu0 0.0
    %1002 = vmatpush1.xpose.msra.mxu0 0.0
    %1003 = vmatprep.subr.mxu0 0.0
    %1004 = vmatpush1.xpose.msra.mxu0 0.0
    %1005 = vmatprep.subr.mxu0 0.0
    %1006 = vmatpush1.xpose.msra.mxu0 %v973
    %1007 = vmatprep.subr.mxu0 0.0
    %1008 = vmatpush2.xpose.msra.mxu0 0.0
    %1009 = vmatprep.subr.mxu0 0.0
    %1010 = vmatpush2.xpose.msra.mxu0 0.0
    %1011 = vmatprep.subr.mxu0 0.0
    %1012 = vmatpush2.xpose.msra.mxu0 0.0
    %1013 = vmatprep.subr.mxu0 0.0
    %1014 = vmatpush2.xpose.msra.mxu0 0.0
    %1015 = vmatprep.subr.mxu0 0.0
    %1016 = vmatpush2.xpose.msra.mxu0 0.0
    %1017 = vmatprep.subr.mxu0 0.0
    %1018 = vmatpush2.xpose.msra.mxu0 0.0
    %1019 = vmatprep.subr.mxu0 0.0
    %1020 = vmatpush2.xpose.msra.mxu0 0.0
    %1021 = vmatprep.subr.mxu0 0.0
    %1022 = vmatpush2.xpose.msra.mxu0 0.0
    %1023 = vmatprep.subr.mxu0 0.0
    %1024 = vmatpush2.xpose.msra.mxu0 0.0
    %1025 = vmatprep.subr.mxu0 0.0
    %1026 = vmatpush2.xpose.msra.mxu0 0.0
    %1027 = vmatprep.subr.mxu0 0.0
    %1028 = vmatpush2.xpose.msra.mxu0 0.0
    %1029 = vmatprep.subr.mxu0 0.0
    %1030 = vmatpush2.xpose.msra.mxu0 0.0
    %1031 = vmatprep.subr.mxu0 0.0
    %1032 = vmatpush2.xpose.msra.mxu0 0.0
    %1033 = vmatprep.subr.mxu0 0.0
    %1034 = vmatpush2.xpose.msra.mxu0 0.0
    %1035 = vmatprep.subr.mxu0 0.0
    %1036 = vmatpush2.xpose.msra.mxu0 0.0
    %1037 = vmatprep.subr.mxu0 0.0
    %1038 = vmatpush2.xpose.msra.mxu0 0.0
    %1039 = vmatprep.mubr.f32.mxu0 0.0
    %1040 = vmatmul.mubr.f32.gmra.mxu0 %v971
    %v1041 = vpop.f32.mrf.mxu0
    %v1042 = vadd.f32 0.0, %v1041
    %v1043 = vpop.f32.mrf.mxu0
    %1044 = vdwg.mxu0
    %v1045 = vmul.f32 %v964, 0.088388346
    %v1046 = vmul.f32 %v1042, 0.088388346
    %v1047 = vsel %vm381, %v1045, -1e+30
    %v1048 = vsel %vm381, %v1046, -1e+30
    %v1049 = vsel %vm384, %v1047, -inf
    %1050 = vmax.xlane.f32.xlu0 %v1049
    %v1051 = vpop.xlane.xlu0 %1050
    %v1052 = vsel %vm384, %v1048, -inf
    %1053 = vmax.xlane.f32.xlu0 %v1052
    %v1054 = vpop.xlane.xlu0 %1053
    %v1055 = vsub.f32 %v1047, %v1051
    %v1056 = vsub.f32 %v1048, %v1054
    %v1057 = vmul.f32 %v1055, 1.442695
    %v1058 = vpow.pop %v1057
    %v1059 = vmul.f32 %v1056, 1.442695
    %v1060 = vpow.pop %v1059
    %v1061 = vsel %vm384, %v1058, 0.0
    %1062 = vadd.xlane.f32.xlu0 %v1061
    %v1063 = vpop.xlane.xlu0 %1062
    %v1064 = vsel %vm384, %v1060, 0.0
    %1065 = vadd.xlane.f32.xlu0 %v1064
    %v1066 = vpop.xlane.xlu0 %1065
    %v1067 = vrcp.pop %v1063
    %v1068 = vrcp.pop %v1066
    %v1069 = vmul.f32 %v1058, %v1067
    %v1070 = vmul.f32 %v1060, %v1068
    %1071 = vrot.lane.b32.xlu0 %v212, 64
    %v1072 = vpop.permute.xlu0 %1071
    %v1075 = vsel %vm384, %v1069, 0
    %1077 = vmatprep.subr.mxu0 0.0
    %1078 = vmatpush1.msra.mxu0 0.0
    %1079 = vmatprep.subr.mxu0 0.0
    %1080 = vmatpush1.msra.mxu0 0.0
    %1081 = vmatprep.subr.mxu0 0.0
    %1082 = vmatpush1.msra.mxu0 0.0
    %1083 = vmatprep.subr.mxu0 0.0
    %1084 = vmatpush1.msra.mxu0 0.0
    %1085 = vmatprep.subr.mxu0 0.0
    %1086 = vmatpush1.msra.mxu0 0.0
    %1087 = vmatprep.subr.mxu0 0.0
    %1088 = vmatpush1.msra.mxu0 0.0
    %1089 = vmatprep.subr.mxu0 0.0
    %1090 = vmatpush1.msra.mxu0 0.0
    %1091 = vmatprep.subr.mxu0 0.0
    %1092 = vmatpush1.msra.mxu0 0.0
    %1093 = vmatprep.subr.mxu0 0.0
    %1094 = vmatpush1.msra.mxu0 0.0
    %1095 = vmatprep.subr.mxu0 0.0
    %1096 = vmatpush1.msra.mxu0 0.0
    %1097 = vmatprep.subr.mxu0 0.0
    %1098 = vmatpush1.msra.mxu0 0.0
    %1099 = vmatprep.subr.mxu0 0.0
    %1100 = vmatpush1.msra.mxu0 0.0
    %1101 = vmatprep.subr.mxu0 0.0
    %1102 = vmatpush1.msra.mxu0 0.0
    %1103 = vmatprep.subr.mxu0 0.0
    %1104 = vmatpush1.msra.mxu0 0.0
    %1105 = vmatprep.subr.mxu0 0.0
    %1106 = vmatpush1.msra.mxu0 0.0
    %1107 = vmatprep.subr.mxu0 0.0
    %1108 = vmatpush1.msra.mxu0 %v1072
    %1109 = vmatprep.subr.mxu0 0.0
    %1110 = vmatpush2.msra.mxu0 0.0
    %1111 = vmatprep.subr.mxu0 0.0
    %1112 = vmatpush2.msra.mxu0 0.0
    %1113 = vmatprep.subr.mxu0 0.0
    %1114 = vmatpush2.msra.mxu0 0.0
    %1115 = vmatprep.subr.mxu0 0.0
    %1116 = vmatpush2.msra.mxu0 0.0
    %1117 = vmatprep.subr.mxu0 0.0
    %1118 = vmatpush2.msra.mxu0 0.0
    %1119 = vmatprep.subr.mxu0 0.0
    %1120 = vmatpush2.msra.mxu0 0.0
    %1121 = vmatprep.subr.mxu0 0.0
    %1122 = vmatpush2.msra.mxu0 0.0
    %1123 = vmatprep.subr.mxu0 0.0
    %1124 = vmatpush2.msra.mxu0 0.0
    %1125 = vmatprep.subr.mxu0 0.0
    %1126 = vmatpush2.msra.mxu0 0.0
    %1127 = vmatprep.subr.mxu0 0.0
    %1128 = vmatpush2.msra.mxu0 0.0
    %1129 = vmatprep.subr.mxu0 0.0
    %1130 = vmatpush2.msra.mxu0 0.0
    %1131 = vmatprep.subr.mxu0 0.0
    %1132 = vmatpush2.msra.mxu0 0.0
    %1133 = vmatprep.subr.mxu0 0.0
    %1134 = vmatpush2.msra.mxu0 0.0
    %1135 = vmatprep.subr.mxu0 0.0
    %1136 = vmatpush2.msra.mxu0 0.0
    %1137 = vmatprep.subr.mxu0 0.0
    %1138 = vmatpush2.msra.mxu0 0.0
    %1139 = vmatprep.subr.mxu0 0.0
    %1140 = vmatpush2.msra.mxu0 0.0
    %1141 = vmatprep.mubr.f32.mxu0 0.0
    %1142 = vmatmul.mubr.f32.gmra.mxu0 %v1075
    %v1143 = vpop.f32.mrf.mxu0
    %v1144 = vadd.f32 0.0, %v1143
    %v1145 = vpop.f32.mrf.mxu0
    %1146 = vdwg.mxu0
    %1147 = vrot.lane.b32.xlu0 %v217, 64
    %v1148 = vpop.permute.xlu0 %1147
    %v1151 = vsel %vm384, %v1070, 0
    %1153 = vmatprep.subr.mxu0 0.0
    %1154 = vmatpush1.msra.mxu0 0.0
    %1155 = vmatprep.subr.mxu0 0.0
    %1156 = vmatpush1.msra.mxu0 0.0
    %1157 = vmatprep.subr.mxu0 0.0
    %1158 = vmatpush1.msra.mxu0 0.0
    %1159 = vmatprep.subr.mxu0 0.0
    %1160 = vmatpush1.msra.mxu0 0.0
    %1161 = vmatprep.subr.mxu0 0.0
    %1162 = vmatpush1.msra.mxu0 0.0
    %1163 = vmatprep.subr.mxu0 0.0
    %1164 = vmatpush1.msra.mxu0 0.0
    %1165 = vmatprep.subr.mxu0 0.0
    %1166 = vmatpush1.msra.mxu0 0.0
    %1167 = vmatprep.subr.mxu0 0.0
    %1168 = vmatpush1.msra.mxu0 0.0
    %1169 = vmatprep.subr.mxu0 0.0
    %1170 = vmatpush1.msra.mxu0 0.0
    %1171 = vmatprep.subr.mxu0 0.0
    %1172 = vmatpush1.msra.mxu0 0.0
    %1173 = vmatprep.subr.mxu0 0.0
    %1174 = vmatpush1.msra.mxu0 0.0
    %1175 = vmatprep.subr.mxu0 0.0
    %1176 = vmatpush1.msra.mxu0 0.0
    %1177 = vmatprep.subr.mxu0 0.0
    %1178 = vmatpush1.msra.mxu0 0.0
    %1179 = vmatprep.subr.mxu0 0.0
    %1180 = vmatpush1.msra.mxu0 0.0
    %1181 = vmatprep.subr.mxu0 0.0
    %1182 = vmatpush1.msra.mxu0 0.0
    %1183 = vmatprep.subr.mxu0 0.0
    %1184 = vmatpush1.msra.mxu0 %v1148
    %1185 = vmatprep.subr.mxu0 0.0
    %1186 = vmatpush2.msra.mxu0 0.0
    %1187 = vmatprep.subr.mxu0 0.0
    %1188 = vmatpush2.msra.mxu0 0.0
    %1189 = vmatprep.subr.mxu0 0.0
    %1190 = vmatpush2.msra.mxu0 0.0
    %1191 = vmatprep.subr.mxu0 0.0
    %1192 = vmatpush2.msra.mxu0 0.0
    %1193 = vmatprep.subr.mxu0 0.0
    %1194 = vmatpush2.msra.mxu0 0.0
    %1195 = vmatprep.subr.mxu0 0.0
    %1196 = vmatpush2.msra.mxu0 0.0
    %1197 = vmatprep.subr.mxu0 0.0
    %1198 = vmatpush2.msra.mxu0 0.0
    %1199 = vmatprep.subr.mxu0 0.0
    %1200 = vmatpush2.msra.mxu0 0.0
    %1201 = vmatprep.subr.mxu0 0.0
    %1202 = vmatpush2.msra.mxu0 0.0
    %1203 = vmatprep.subr.mxu0 0.0
    %1204 = vmatpush2.msra.mxu0 0.0
    %1205 = vmatprep.subr.mxu0 0.0
    %1206 = vmatpush2.msra.mxu0 0.0
    %1207 = vmatprep.subr.mxu0 0.0
    %1208 = vmatpush2.msra.mxu0 0.0
    %1209 = vmatprep.subr.mxu0 0.0
    %1210 = vmatpush2.msra.mxu0 0.0
    %1211 = vmatprep.subr.mxu0 0.0
    %1212 = vmatpush2.msra.mxu0 0.0
    %1213 = vmatprep.subr.mxu0 0.0
    %1214 = vmatpush2.msra.mxu0 0.0
    %1215 = vmatprep.subr.mxu0 0.0
    %1216 = vmatpush2.msra.mxu0 0.0
    %1217 = vmatprep.mubr.f32.mxu0 0.0
    %1218 = vmatmul.mubr.f32.gmra.mxu0 %v1151
    %v1219 = vpop.f32.mrf.mxu0
    %v1220 = vadd.f32 0.0, %v1219
    %v1221 = vpop.f32.mrf.mxu0
    %1222 = vdwg.mxu0
    %1223 = vrot.lane.b32.xlu0 %v135, 32
    %v1224 = vpop.permute.xlu0 %1223
    %1225 = vrot.lane.b32.xlu0 %v137, 32
    %v1226 = vpop.permute.xlu0 %1225
    %v1227 = vsel %vm225, %v1224, 0
    %v1229 = vsel %vm225, %v1226, 0
    %1231 = vmatprep.subr.mxu0 0.0
    %1232 = vmatpush1.xpose.msra.mxu0 0.0
    %1233 = vmatprep.subr.mxu0 0.0
    %1234 = vmatpush1.xpose.msra.mxu0 0.0
    %1235 = vmatprep.subr.mxu0 0.0
    %1236 = vmatpush1.xpose.msra.mxu0 0.0
    %1237 = vmatprep.subr.mxu0 0.0
    %1238 = vmatpush1.xpose.msra.mxu0 0.0
    %1239 = vmatprep.subr.mxu0 0.0
    %1240 = vmatpush1.xpose.msra.mxu0 0.0
    %1241 = vmatprep.subr.mxu0 0.0
    %1242 = vmatpush1.xpose.msra.mxu0 0.0
    %1243 = vmatprep.subr.mxu0 0.0
    %1244 = vmatpush1.xpose.msra.mxu0 0.0
    %1245 = vmatprep.subr.mxu0 0.0
    %1246 = vmatpush1.xpose.msra.mxu0 0.0
    %1247 = vmatprep.subr.mxu0 0.0
    %1248 = vmatpush1.xpose.msra.mxu0 0.0
    %1249 = vmatprep.subr.mxu0 0.0
    %1250 = vmatpush1.xpose.msra.mxu0 0.0
    %1251 = vmatprep.subr.mxu0 0.0
    %1252 = vmatpush1.xpose.msra.mxu0 0.0
    %1253 = vmatprep.subr.mxu0 0.0
    %1254 = vmatpush1.xpose.msra.mxu0 0.0
    %1255 = vmatprep.subr.mxu0 0.0
    %1256 = vmatpush1.xpose.msra.mxu0 0.0
    %1257 = vmatprep.subr.mxu0 0.0
    %1258 = vmatpush1.xpose.msra.mxu0 0.0
    %1259 = vmatprep.subr.mxu0 0.0
    %1260 = vmatpush1.xpose.msra.mxu0 0.0
    %1261 = vmatprep.subr.mxu0 0.0
    %1262 = vmatpush1.xpose.msra.mxu0 %v1229
    %1263 = vmatprep.subr.mxu0 0.0
    %1264 = vmatpush2.xpose.msra.mxu0 0.0
    %1265 = vmatprep.subr.mxu0 0.0
    %1266 = vmatpush2.xpose.msra.mxu0 0.0
    %1267 = vmatprep.subr.mxu0 0.0
    %1268 = vmatpush2.xpose.msra.mxu0 0.0
    %1269 = vmatprep.subr.mxu0 0.0
    %1270 = vmatpush2.xpose.msra.mxu0 0.0
    %1271 = vmatprep.subr.mxu0 0.0
    %1272 = vmatpush2.xpose.msra.mxu0 0.0
    %1273 = vmatprep.subr.mxu0 0.0
    %1274 = vmatpush2.xpose.msra.mxu0 0.0
    %1275 = vmatprep.subr.mxu0 0.0
    %1276 = vmatpush2.xpose.msra.mxu0 0.0
    %1277 = vmatprep.subr.mxu0 0.0
    %1278 = vmatpush2.xpose.msra.mxu0 0.0
    %1279 = vmatprep.subr.mxu0 0.0
    %1280 = vmatpush2.xpose.msra.mxu0 0.0
    %1281 = vmatprep.subr.mxu0 0.0
    %1282 = vmatpush2.xpose.msra.mxu0 0.0
    %1283 = vmatprep.subr.mxu0 0.0
    %1284 = vmatpush2.xpose.msra.mxu0 0.0
    %1285 = vmatprep.subr.mxu0 0.0
    %1286 = vmatpush2.xpose.msra.mxu0 0.0
    %1287 = vmatprep.subr.mxu0 0.0
    %1288 = vmatpush2.xpose.msra.mxu0 0.0
    %1289 = vmatprep.subr.mxu0 0.0
    %1290 = vmatpush2.xpose.msra.mxu0 0.0
    %1291 = vmatprep.subr.mxu0 0.0
    %1292 = vmatpush2.xpose.msra.mxu0 0.0
    %1293 = vmatprep.subr.mxu0 0.0
    %1294 = vmatpush2.xpose.msra.mxu0 0.0
    %1295 = vmatprep.mubr.f32.mxu0 0.0
    %1296 = vmatmul.mubr.f32.gmra.mxu0 %v1227
    %v1297 = vpop.f32.mrf.mxu0
    %v1298 = vadd.f32 0.0, %v1297
    %v1299 = vpop.f32.mrf.mxu0
    %1300 = vdwg.mxu0
    %1301 = vrot.lane.b32.xlu0 %v141, 32
    %v1302 = vpop.permute.xlu0 %1301
    %1303 = vrot.lane.b32.xlu0 %v143, 32
    %v1304 = vpop.permute.xlu0 %1303
    %v1305 = vsel %vm225, %v1302, 0
    %v1307 = vsel %vm225, %v1304, 0
    %1309 = vmatprep.subr.mxu0 0.0
    %1310 = vmatpush1.xpose.msra.mxu0 0.0
    %1311 = vmatprep.subr.mxu0 0.0
    %1312 = vmatpush1.xpose.msra.mxu0 0.0
    %1313 = vmatprep.subr.mxu0 0.0
    %1314 = vmatpush1.xpose.msra.mxu0 0.0
    %1315 = vmatprep.subr.mxu0 0.0
    %1316 = vmatpush1.xpose.msra.mxu0 0.0
    %1317 = vmatprep.subr.mxu0 0.0
    %1318 = vmatpush1.xpose.msra.mxu0 0.0
    %1319 = vmatprep.subr.mxu0 0.0
    %1320 = vmatpush1.xpose.msra.mxu0 0.0
    %1321 = vmatprep.subr.mxu0 0.0
    %1322 = vmatpush1.xpose.msra.mxu0 0.0
    %1323 = vmatprep.subr.mxu0 0.0
    %1324 = vmatpush1.xpose.msra.mxu0 0.0
    %1325 = vmatprep.subr.mxu0 0.0
    %1326 = vmatpush1.xpose.msra.mxu0 0.0
    %1327 = vmatprep.subr.mxu0 0.0
    %1328 = vmatpush1.xpose.msra.mxu0 0.0
    %1329 = vmatprep.subr.mxu0 0.0
    %1330 = vmatpush1.xpose.msra.mxu0 0.0
    %1331 = vmatprep.subr.mxu0 0.0
    %1332 = vmatpush1.xpose.msra.mxu0 0.0
    %1333 = vmatprep.subr.mxu0 0.0
    %1334 = vmatpush1.xpose.msra.mxu0 0.0
    %1335 = vmatprep.subr.mxu0 0.0
    %1336 = vmatpush1.xpose.msra.mxu0 0.0
    %1337 = vmatprep.subr.mxu0 0.0
    %1338 = vmatpush1.xpose.msra.mxu0 0.0
    %1339 = vmatprep.subr.mxu0 0.0
    %1340 = vmatpush1.xpose.msra.mxu0 %v1307
    %1341 = vmatprep.subr.mxu0 0.0
    %1342 = vmatpush2.xpose.msra.mxu0 0.0
    %1343 = vmatprep.subr.mxu0 0.0
    %1344 = vmatpush2.xpose.msra.mxu0 0.0
    %1345 = vmatprep.subr.mxu0 0.0
    %1346 = vmatpush2.xpose.msra.mxu0 0.0
    %1347 = vmatprep.subr.mxu0 0.0
    %1348 = vmatpush2.xpose.msra.mxu0 0.0
    %1349 = vmatprep.subr.mxu0 0.0
    %1350 = vmatpush2.xpose.msra.mxu0 0.0
    %1351 = vmatprep.subr.mxu0 0.0
    %1352 = vmatpush2.xpose.msra.mxu0 0.0
    %1353 = vmatprep.subr.mxu0 0.0
    %1354 = vmatpush2.xpose.msra.mxu0 0.0
    %1355 = vmatprep.subr.mxu0 0.0
    %1356 = vmatpush2.xpose.msra.mxu0 0.0
    %1357 = vmatprep.subr.mxu0 0.0
    %1358 = vmatpush2.xpose.msra.mxu0 0.0
    %1359 = vmatprep.subr.mxu0 0.0
    %1360 = vmatpush2.xpose.msra.mxu0 0.0
    %1361 = vmatprep.subr.mxu0 0.0
    %1362 = vmatpush2.xpose.msra.mxu0 0.0
    %1363 = vmatprep.subr.mxu0 0.0
    %1364 = vmatpush2.xpose.msra.mxu0 0.0
    %1365 = vmatprep.subr.mxu0 0.0
    %1366 = vmatpush2.xpose.msra.mxu0 0.0
    %1367 = vmatprep.subr.mxu0 0.0
    %1368 = vmatpush2.xpose.msra.mxu0 0.0
    %1369 = vmatprep.subr.mxu0 0.0
    %1370 = vmatpush2.xpose.msra.mxu0 0.0
    %1371 = vmatprep.subr.mxu0 0.0
    %1372 = vmatpush2.xpose.msra.mxu0 0.0
    %1373 = vmatprep.mubr.f32.mxu0 0.0
    %1374 = vmatmul.mubr.f32.gmra.mxu0 %v1305
    %v1375 = vpop.f32.mrf.mxu0
    %v1376 = vadd.f32 0.0, %v1375
    %v1377 = vpop.f32.mrf.mxu0
    %1378 = vdwg.mxu0
    %v1379 = vmul.f32 %v1298, 0.088388346
    %v1380 = vmul.f32 %v1376, 0.088388346
    %v1381 = vsel %vm381, %v1379, -1e+30
    %v1382 = vsel %vm381, %v1380, -1e+30
    %v1383 = vsel %vm384, %v1381, -inf
    %1384 = vmax.xlane.f32.xlu0 %v1383
    %v1385 = vpop.xlane.xlu0 %1384
    %v1386 = vsel %vm384, %v1382, -inf
    %1387 = vmax.xlane.f32.xlu0 %v1386
    %v1388 = vpop.xlane.xlu0 %1387
    %v1389 = vsub.f32 %v1381, %v1385
    %v1390 = vsub.f32 %v1382, %v1388
    %v1391 = vmul.f32 %v1389, 1.442695
    %v1392 = vpow.pop %v1391
    %v1393 = vmul.f32 %v1390, 1.442695
    %v1394 = vpow.pop %v1393
    %v1395 = vsel %vm384, %v1392, 0.0
    %1396 = vadd.xlane.f32.xlu0 %v1395
    %v1397 = vpop.xlane.xlu0 %1396
    %v1398 = vsel %vm384, %v1394, 0.0
    %1399 = vadd.xlane.f32.xlu0 %v1398
    %v1400 = vpop.xlane.xlu0 %1399
    %v1401 = vrcp.pop %v1397
    %v1402 = vrcp.pop %v1400
    %v1403 = vmul.f32 %v1392, %v1401
    %v1404 = vmul.f32 %v1394, %v1402
    %1405 = vrot.lane.b32.xlu0 %v212, 32
    %v1406 = vpop.permute.xlu0 %1405
    %v1409 = vsel %vm384, %v1403, 0
    %1411 = vmatprep.subr.mxu0 0.0
    %1412 = vmatpush1.msra.mxu0 0.0
    %1413 = vmatprep.subr.mxu0 0.0
    %1414 = vmatpush1.msra.mxu0 0.0
    %1415 = vmatprep.subr.mxu0 0.0
    %1416 = vmatpush1.msra.mxu0 0.0
    %1417 = vmatprep.subr.mxu0 0.0
    %1418 = vmatpush1.msra.mxu0 0.0
    %1419 = vmatprep.subr.mxu0 0.0
    %1420 = vmatpush1.msra.mxu0 0.0
    %1421 = vmatprep.subr.mxu0 0.0
    %1422 = vmatpush1.msra.mxu0 0.0
    %1423 = vmatprep.subr.mxu0 0.0
    %1424 = vmatpush1.msra.mxu0 0.0
    %1425 = vmatprep.subr.mxu0 0.0
    %1426 = vmatpush1.msra.mxu0 0.0
    %1427 = vmatprep.subr.mxu0 0.0
    %1428 = vmatpush1.msra.mxu0 0.0
    %1429 = vmatprep.subr.mxu0 0.0
    %1430 = vmatpush1.msra.mxu0 0.0
    %1431 = vmatprep.subr.mxu0 0.0
    %1432 = vmatpush1.msra.mxu0 0.0
    %1433 = vmatprep.subr.mxu0 0.0
    %1434 = vmatpush1.msra.mxu0 0.0
    %1435 = vmatprep.subr.mxu0 0.0
    %1436 = vmatpush1.msra.mxu0 0.0
    %1437 = vmatprep.subr.mxu0 0.0
    %1438 = vmatpush1.msra.mxu0 0.0
    %1439 = vmatprep.subr.mxu0 0.0
    %1440 = vmatpush1.msra.mxu0 0.0
    %1441 = vmatprep.subr.mxu0 0.0
    %1442 = vmatpush1.msra.mxu0 %v1406
    %1443 = vmatprep.subr.mxu0 0.0
    %1444 = vmatpush2.msra.mxu0 0.0
    %1445 = vmatprep.subr.mxu0 0.0
    %1446 = vmatpush2.msra.mxu0 0.0
    %1447 = vmatprep.subr.mxu0 0.0
    %1448 = vmatpush2.msra.mxu0 0.0
    %1449 = vmatprep.subr.mxu0 0.0
    %1450 = vmatpush2.msra.mxu0 0.0
    %1451 = vmatprep.subr.mxu0 0.0
    %1452 = vmatpush2.msra.mxu0 0.0
    %1453 = vmatprep.subr.mxu0 0.0
    %1454 = vmatpush2.msra.mxu0 0.0
    %1455 = vmatprep.subr.mxu0 0.0
    %1456 = vmatpush2.msra.mxu0 0.0
    %1457 = vmatprep.subr.mxu0 0.0
    %1458 = vmatpush2.msra.mxu0 0.0
    %1459 = vmatprep.subr.mxu0 0.0
    %1460 = vmatpush2.msra.mxu0 0.0
    %1461 = vmatprep.subr.mxu0 0.0
    %1462 = vmatpush2.msra.mxu0 0.0
    %1463 = vmatprep.subr.mxu0 0.0
    %1464 = vmatpush2.msra.mxu0 0.0
    %1465 = vmatprep.subr.mxu0 0.0
    %1466 = vmatpush2.msra.mxu0 0.0
    %1467 = vmatprep.subr.mxu0 0.0
    %1468 = vmatpush2.msra.mxu0 0.0
    %1469 = vmatprep.subr.mxu0 0.0
    %1470 = vmatpush2.msra.mxu0 0.0
    %1471 = vmatprep.subr.mxu0 0.0
    %1472 = vmatpush2.msra.mxu0 0.0
    %1473 = vmatprep.subr.mxu0 0.0
    %1474 = vmatpush2.msra.mxu0 0.0
    %1475 = vmatprep.mubr.f32.mxu0 0.0
    %1476 = vmatmul.mubr.f32.gmra.mxu0 %v1409
    %v1477 = vpop.f32.mrf.mxu0
    %v1478 = vadd.f32 0.0, %v1477
    %v1479 = vpop.f32.mrf.mxu0
    %1480 = vdwg.mxu0
    %1481 = vrot.lane.b32.xlu0 %v217, 32
    %v1482 = vpop.permute.xlu0 %1481
    %v1485 = vsel %vm384, %v1404, 0
    %1487 = vmatprep.subr.mxu0 0.0
    %1488 = vmatpush1.msra.mxu0 0.0
    %1489 = vmatprep.subr.mxu0 0.0
    %1490 = vmatpush1.msra.mxu0 0.0
    %1491 = vmatprep.subr.mxu0 0.0
    %1492 = vmatpush1.msra.mxu0 0.0
    %1493 = vmatprep.subr.mxu0 0.0
    %1494 = vmatpush1.msra.mxu0 0.0
    %1495 = vmatprep.subr.mxu0 0.0
    %1496 = vmatpush1.msra.mxu0 0.0
    %1497 = vmatprep.subr.mxu0 0.0
    %1498 = vmatpush1.msra.mxu0 0.0
    %1499 = vmatprep.subr.mxu0 0.0
    %1500 = vmatpush1.msra.mxu0 0.0
    %1501 = vmatprep.subr.mxu0 0.0
    %1502 = vmatpush1.msra.mxu0 0.0
    %1503 = vmatprep.subr.mxu0 0.0
    %1504 = vmatpush1.msra.mxu0 0.0
    %1505 = vmatprep.subr.mxu0 0.0
    %1506 = vmatpush1.msra.mxu0 0.0
    %1507 = vmatprep.subr.mxu0 0.0
    %1508 = vmatpush1.msra.mxu0 0.0
    %1509 = vmatprep.subr.mxu0 0.0
    %1510 = vmatpush1.msra.mxu0 0.0
    %1511 = vmatprep.subr.mxu0 0.0
    %1512 = vmatpush1.msra.mxu0 0.0
    %1513 = vmatprep.subr.mxu0 0.0
    %1514 = vmatpush1.msra.mxu0 0.0
    %1515 = vmatprep.subr.mxu0 0.0
    %1516 = vmatpush1.msra.mxu0 0.0
    %1517 = vmatprep.subr.mxu0 0.0
    %1518 = vmatpush1.msra.mxu0 %v1482
    %1519 = vmatprep.subr.mxu0 0.0
    %1520 = vmatpush2.msra.mxu0 0.0
    %1521 = vmatprep.subr.mxu0 0.0
    %1522 = vmatpush2.msra.mxu0 0.0
    %1523 = vmatprep.subr.mxu0 0.0
    %1524 = vmatpush2.msra.mxu0 0.0
    %1525 = vmatprep.subr.mxu0 0.0
    %1526 = vmatpush2.msra.mxu0 0.0
    %1527 = vmatprep.subr.mxu0 0.0
    %1528 = vmatpush2.msra.mxu0 0.0
    %1529 = vmatprep.subr.mxu0 0.0
    %1530 = vmatpush2.msra.mxu0 0.0
    %1531 = vmatprep.subr.mxu0 0.0
    %1532 = vmatpush2.msra.mxu0 0.0
    %1533 = vmatprep.subr.mxu0 0.0
    %1534 = vmatpush2.msra.mxu0 0.0
    %1535 = vmatprep.subr.mxu0 0.0
    %1536 = vmatpush2.msra.mxu0 0.0
    %1537 = vmatprep.subr.mxu0 0.0
    %1538 = vmatpush2.msra.mxu0 0.0
    %1539 = vmatprep.subr.mxu0 0.0
    %1540 = vmatpush2.msra.mxu0 0.0
    %1541 = vmatprep.subr.mxu0 0.0
    %1542 = vmatpush2.msra.mxu0 0.0
    %1543 = vmatprep.subr.mxu0 0.0
    %1544 = vmatpush2.msra.mxu0 0.0
    %1545 = vmatprep.subr.mxu0 0.0
    %1546 = vmatpush2.msra.mxu0 0.0
    %1547 = vmatprep.subr.mxu0 0.0
    %1548 = vmatpush2.msra.mxu0 0.0
    %1549 = vmatprep.subr.mxu0 0.0
    %1550 = vmatpush2.msra.mxu0 0.0
    %1551 = vmatprep.mubr.f32.mxu0 0.0
    %1552 = vmatmul.mubr.f32.gmra.mxu0 %v1485
    %v1553 = vpop.f32.mrf.mxu0
    %v1554 = vadd.f32 0.0, %v1553
    %v1555 = vpop.f32.mrf.mxu0
    %1556 = vdwg.mxu0
    %1559 = vrot.lane.b32.xlu0 %v809, 32
    %v1560 = vpop.permute.xlu0 %1559
    %1561 = vrot.lane.b32.xlu0 %v886, 32
    %v1562 = vpop.permute.xlu0 %1561
    %1567 = vrot.lane.b32.xlu0 %v1144, 64
    %v1568 = vpop.permute.xlu0 %1567
    %1569 = vrot.lane.b32.xlu0 %v1220, 64
    %v1570 = vpop.permute.xlu0 %1569
    %1575 = vrot.lane.b32.xlu0 %v1478, 96
    %v1576 = vpop.permute.xlu0 %1575
    %1577 = vrot.lane.b32.xlu0 %v1554, 96
    %v1578 = vpop.permute.xlu0 %1577
    %v1581 = vsel %vm225, %v477, %v1560
    %v1582 = vsel %vm225, %v550, %v1562
    %vm1583 = vcmask 523264
    %v1584 = vsel %vm1583, %v1581, %v1568
    %v1585 = vsel %vm1583, %v1582, %v1570
    %vm1586 = vcmask 785408
    %v1587 = vsel %vm1586, %v1584, %v1576
    %v1588 = vsel %vm1586, %v1585, %v1578
    %v1589 = vld [vmem:[%s2] sm:$0xff]
    %v1590 = vld [vmem:[%s2 + $0x8] sm:$0xff]
    %v1591 = vld [vmem:[%s2 + $0x10] sm:$0xff]
    %v1592 = vld [vmem:[%s2 + $0x18] sm:$0xff]
    %v1593 = vld [vmem:[%s2 + $0x20] sm:$0xff]
    %v1594 = vld [vmem:[%s2 + $0x28] sm:$0xff]
    %v1595 = vld [vmem:[%s2 + $0x30] sm:$0xff]
    %v1596 = vld [vmem:[%s2 + $0x38] sm:$0xff]
    %v1597 = vld [vmem:[%s2 + $0x40] sm:$0xff]
    %v1598 = vld [vmem:[%s2 + $0x48] sm:$0xff]
    %v1599 = vld [vmem:[%s2 + $0x50] sm:$0xff]
    %v1600 = vld [vmem:[%s2 + $0x58] sm:$0xff]
    %v1601 = vld [vmem:[%s2 + $0x60] sm:$0xff]
    %v1602 = vld [vmem:[%s2 + $0x68] sm:$0xff]
    %v1603 = vld [vmem:[%s2 + $0x70] sm:$0xff]
    %v1604 = vld [vmem:[%s2 + $0x78] sm:$0xff]
    %v1605 = vld [vmem:[%s3] sm:$0x1]
    %v1607 = vlaneseq
    %v1608 = vshrl.u32 %v1607, 7
    %v1609 = vsub.s32 0, %v1608
    %v1610 = vrot.slane %v1605, %v1609
    %1612 = vmatprep.subr.mxu0 0.0
    %1613 = vmatpush1.msra.mxu0 %v1604
    %1614 = vmatprep.subr.mxu0 0.0
    %1615 = vmatpush1.msra.mxu0 %v1603
    %1616 = vmatprep.subr.mxu0 0.0
    %1617 = vmatpush1.msra.mxu0 %v1602
    %1618 = vmatprep.subr.mxu0 0.0
    %1619 = vmatpush1.msra.mxu0 %v1601
    %1620 = vmatprep.subr.mxu0 0.0
    %1621 = vmatpush1.msra.mxu0 %v1600
    %1622 = vmatprep.subr.mxu0 0.0
    %1623 = vmatpush1.msra.mxu0 %v1599
    %1624 = vmatprep.subr.mxu0 0.0
    %1625 = vmatpush1.msra.mxu0 %v1598
    %1626 = vmatprep.subr.mxu0 0.0
    %1627 = vmatpush1.msra.mxu0 %v1597
    %1628 = vmatprep.subr.mxu0 0.0
    %1629 = vmatpush1.msra.mxu0 %v1596
    %1630 = vmatprep.subr.mxu0 0.0
    %1631 = vmatpush1.msra.mxu0 %v1595
    %1632 = vmatprep.subr.mxu0 0.0
    %1633 = vmatpush1.msra.mxu0 %v1594
    %1634 = vmatprep.subr.mxu0 0.0
    %1635 = vmatpush1.msra.mxu0 %v1593
    %1636 = vmatprep.subr.mxu0 0.0
    %1637 = vmatpush1.msra.mxu0 %v1592
    %1638 = vmatprep.subr.mxu0 0.0
    %1639 = vmatpush1.msra.mxu0 %v1591
    %1640 = vmatprep.subr.mxu0 0.0
    %1641 = vmatpush1.msra.mxu0 %v1590
    %1642 = vmatprep.subr.mxu0 0.0
    %1643 = vmatpush1.msra.mxu0 %v1589
    %1644 = vmatprep.subr.mxu0 0.0
    %1645 = vmatpush2.msra.mxu0 0.0
    %1646 = vmatprep.subr.mxu0 0.0
    %1647 = vmatpush2.msra.mxu0 0.0
    %1648 = vmatprep.subr.mxu0 0.0
    %1649 = vmatpush2.msra.mxu0 0.0
    %1650 = vmatprep.subr.mxu0 0.0
    %1651 = vmatpush2.msra.mxu0 0.0
    %1652 = vmatprep.subr.mxu0 0.0
    %1653 = vmatpush2.msra.mxu0 0.0
    %1654 = vmatprep.subr.mxu0 0.0
    %1655 = vmatpush2.msra.mxu0 0.0
    %1656 = vmatprep.subr.mxu0 0.0
    %1657 = vmatpush2.msra.mxu0 0.0
    %1658 = vmatprep.subr.mxu0 0.0
    %1659 = vmatpush2.msra.mxu0 0.0
    %1660 = vmatprep.subr.mxu0 0.0
    %1661 = vmatpush2.msra.mxu0 0.0
    %1662 = vmatprep.subr.mxu0 0.0
    %1663 = vmatpush2.msra.mxu0 0.0
    %1664 = vmatprep.subr.mxu0 0.0
    %1665 = vmatpush2.msra.mxu0 0.0
    %1666 = vmatprep.subr.mxu0 0.0
    %1667 = vmatpush2.msra.mxu0 0.0
    %1668 = vmatprep.subr.mxu0 0.0
    %1669 = vmatpush2.msra.mxu0 0.0
    %1670 = vmatprep.subr.mxu0 0.0
    %1671 = vmatpush2.msra.mxu0 0.0
    %1672 = vmatprep.subr.mxu0 0.0
    %1673 = vmatpush2.msra.mxu0 0.0
    %1674 = vmatprep.subr.mxu0 0.0
    %1675 = vmatpush2.msra.mxu0 0.0
    %1676 = vmatprep.mubr.f32.mxu0 0.0
    %1677 = vmatmul.mubr.f32.gmra.mxu0 %v1587
    %v1678 = vpop.f32.mrf.mxu0
    %v1679 = vadd.f32 %v1610, %v1678
    %v1680 = vpop.f32.mrf.mxu0
    %1681 = vmatprep.mubr.f32.mxu0 0.0
    %1682 = vmatmul.mubr.f32.gmra.mxu0 %v1588
    %v1683 = vpop.f32.mrf.mxu0
    %v1684 = vadd.f32 %v1610, %v1683
    %v1685 = vpop.f32.mrf.mxu0
    %1686 = vdwg.mxu0
    %1687 = vst [vmem:[#allocation2] sm:$0xff] %v1679
    %1688 = vst [vmem:[#allocation2 + $0x8] sm:$0xff] %v1684
    // Predicated region
    $region18: #{multi_head_attention.1} parent=1 // pred_check
      _
    $region19: #{multi_head_attention.1} parent=1 // pred_check_branch
      %1690 = sbr.rel (0) target = $region21
    $region20: #{multi_head_attention.1} parent=1 // pred_region
      %s1692 = ssub.s32 256, 256
      %1693 = vsyncadd [#allocation3], %s1692
      %s1694 = sshll.u32 [#allocation2], 4
      %s1695 = int_to_ptr.vmem [resolvable:$true] %s1694
      %1700 = dma.vmem_to_hbm [thread:$0]  %s1695, 256, %s4, [#allocation3], 128, 128, 8
    $region21: #{multi_head_attention.1} parent=1 // pred_fallthru
      _
    // Predicated region
    $region22: #{multi_head_attention.1} parent=1 // pred_check
      _
    $region23: #{multi_head_attention.1} parent=1 // pred_check_branch
      %1702 = sbr.rel (0) target = $region25
    $region24: #{multi_head_attention.1} parent=1 // pred_region
      %1703 = dma.done [#allocation3], 256
    $region25: #{multi_head_attention.1} parent=1 // pred_fallthru
      _
    %1704 = vsyncpa [#allocation3], 1

</llo_original>
